<compile_context>
chip_gen: v7x
topology: tpu7x:2x2x1
jax: 0.10.0
libtpu: 0.0.40
codegen_flags: <defaults>
</compile_context>

<pallas_src>
import functools
import math

import numpy as np
import jax
import jax.numpy as jnp
from jax import lax
from jax.experimental import pallas as pl
from jax.experimental.pallas import tpu as pltpu

# ----------------------------- configuration --------------------------------
NFFT = 256
HOP = NFFT // 4            # overlap = 0.75
RATIO = NFFT // HOP        # 4
SR = 16000
NB_BARK = 24
F_BINS = NFFT // 2 + 1     # 129
F_PAD = 256                # lane-dense padded freq axis (2 x 128 lanes)
EMB_HIDDEN = 32
MAX_GAIN_DB = 12.0         # gain_clamping.max_positive_clamping_value
MIN_GAIN_DB = -30.0        # gain_clamping.min_negative_clamping_value
TAU_ATTACK = 0.25
TAU_RELEASE = 0.25
THR_OFFSET_DB = -9.5       # synthetic masking-threshold offset
# TODO(synk): exact MaskingThresholds / TargetFilter / DPNMM internals are not
# available in the reference; they are replaced by deterministic synthetic
# bark-mapping / spreading matrices and a small MLP gain predictor.

# Row layout of the packed MLP weight buffer (all starts multiples of 8).
_W1_ROW = 0                      # rows 0:72   -> w1  (3*NB, H)
_B1_ROW = 3 * NB_BARK            # row  72     -> b1  (1, H)
_W2_ROW = 80                     # rows 80:112 -> w2  (H, NB) in lanes 0:NB
_B2_ROW = 112                    # row  112    -> b2  (1, NB) in lanes 0:NB
_MLP_ROWS = 120

_HANN = (0.5 - 0.5 * np.cos(2.0 * np.pi * np.arange(NFFT) / NFFT)).astype(np.float32)


def _vmem_spec():
    return pl.BlockSpec(memory_space=pltpu.MemorySpace.VMEM)


# ----------------------------- fused Pallas kernel ---------------------------
def fused_kernel(stft_ref, w_bt_ref, w_b2h_ref, w_mlp_ref, big_ref, gm_ref, *,
                 n_frames, alpha_attack, alpha_release):
    """bark features + thresholds + dB + gain MLP + smoothing + target filter.

    stft_ref : (4*Tp, F_PAD) = [music_re ; noise_re ; music_im ; noise_im]
    w_bt_ref : (F_PAD, 2*NB) = [hz->bark | spread-threshold (scaled)]
    w_b2h_ref: (NB, F_PAD)     bark->hz expansion
    w_mlp_ref: (120, H)        packed w1/b1/w2/b2
    big_ref  : (3*Tp, F_PAD) = [new_re ; new_im ; target_filter]
    gm_ref   : (Tp, 2*NB)    = [smoothed gains | threshold mask]
    """
    buf = stft_ref[...]
    tp = buf.shape[0] // 4
    re2 = buf[0:2 * tp]                                    # music/noise real, (2Tp, F)
    im2 = buf[2 * tp:4 * tp]                               # music/noise imag
    psd2 = re2 * re2 + im2 * im2                           # |stft|^2, (2Tp, F)

    # music & noise hz->bark AND music masking-threshold in ONE MXU matmul.
    bt = jnp.dot(psd2, w_bt_ref[...],
                 preferred_element_type=jnp.float32)       # (2Tp, 2NB)

    eps = 1e-12
    c = 10.0 / math.log(10.0)                              # linear2dB(x, 10)
    db = c * jnp.log(bt + eps)                             # one EUP pass
    m_db = db[0:tp, 0:NB_BARK]                             # music bark dB
    t_db = db[0:tp, NB_BARK:2 * NB_BARK]                   # masking threshold dB
    n_db = db[tp:2 * tp, 0:NB_BARK]                        # noise bark dB
    mask = jnp.where(n_db > t_db, 1.0, 0.0)                # (Tp, NB)

    # gain predictor (synthetic DPNMM stand-in); w1 kept in 3 blocks so no
    # in-kernel lane concatenation of [m_db|n_db|t_db] is needed.
    wm = w_mlp_ref[...]
    w1m = wm[_W1_ROW:_W1_ROW + NB_BARK]
    w1n = wm[_W1_ROW + NB_BARK:_W1_ROW + 2 * NB_BARK]
    w1t = wm[_W1_ROW + 2 * NB_BARK:_W1_ROW + 3 * NB_BARK]
    b1 = wm[_B1_ROW:_B1_ROW + 1]
    w2 = wm[_W2_ROW:_W2_ROW + EMB_HIDDEN, 0:NB_BARK]
    b2 = wm[_B2_ROW:_B2_ROW + 1, 0:NB_BARK]

    h = jnp.tanh(jnp.dot(m_db, w1m, preferred_element_type=jnp.float32)
                 + jnp.dot(n_db, w1n, preferred_element_type=jnp.float32)
                 + jnp.dot(t_db, w1t, preferred_element_type=jnp.float32)
                 + b1)
    g = jnp.dot(h, w2, preferred_element_type=jnp.float32) + b2
    gains = jnp.clip(g, MIN_GAIN_DB, MAX_GAIN_DB)          # (Tp, NB), gain clamping

    # Temporal smoothing: recurrence kept entirely in registers (no VMEM
    # round-trips), fully unrolled over the (static) real frame count.
    # NOTE: attack applied when gain decreases (same convention as before);
    # tau_attack == tau_release so the branch is currently inert.
    prev = gains[0:1, :]
    rows = []
    for t in range(n_frames):
        g_t = gains[t:t + 1, :]
        alpha = jnp.where(g_t < prev, alpha_attack, alpha_release)
        prev = alpha * prev + (1.0 - alpha) * g_t
        rows.append(prev)
    for t in range(n_frames, tp):                          # padded frames: pass-through
        rows.append(gains[t:t + 1, :])
    gsm = jnp.concatenate(rows, axis=0)                    # (Tp, NB), in registers

    # one store for smoothed gains + mask (single small output DMA)
    gm_ref[...] = jnp.concatenate([gsm, mask], axis=-1)    # (Tp, 2NB)

    # bark -> hz target filter, lane-dense F
    filt_db = jnp.dot(gsm, w_b2h_ref[...],
                      preferred_element_type=jnp.float32)  # (Tp, F)
    filt = jnp.exp(filt_db * (math.log(10.0) / 20.0))      # 10^(dB/20)

    m_re = re2[0:tp]
    m_im = im2[0:tp]
    big_ref[0:tp, :] = m_re * filt                         # complex STFT filtering
    big_ref[tp:2 * tp, :] = m_im * filt
    big_ref[2 * tp:3 * tp, :] = filt                       # target filter


# ----------------------------- JAX glue (STFT etc.) --------------------------
def stft_real_imag(wav):
    """wav: (samples,) -> real/imag (T, F_BINS) float32 (no centering, 75% overlap)."""
    n_frames = (wav.shape[-1] - NFFT) // HOP + 1
    idx = np.arange(n_frames)[:, None] * HOP + np.arange(NFFT)[None, :]
    frames = wav[idx] * jnp.asarray(_HANN)[None, :]
    spec = jnp.fft.rfft(frames, axis=-1)                   # (T, F) complex64
    return jnp.real(spec).astype(jnp.float32), jnp.imag(spec).astype(jnp.float32)


def _ola_window_sq(n_frames, length):
    """Input-independent window^2 overlap-add normalizer -> trace-time constant."""
    win2 = (_HANN.astype(np.float64)) ** 2
    total = (n_frames + RATIO - 1) * HOP
    wsum = np.zeros((max(total, length),), np.float64)
    for t in range(n_frames):
        wsum[t * HOP: t * HOP + NFFT] += win2
    return jnp.asarray((wsum[:length] + 1e-8).astype(np.float32))


def istft_real_imag(re, im, length):
    """(T, F_BINS) real/imag -> (length,) via vectorized windowed overlap-add."""
    # TODO(synk): analysis-window OLA approximation; not bit-exact torch.istft.
    n_frames = re.shape[0]
    spec = lax.complex(re, im)
    frames = jnp.fft.irfft(spec, n=NFFT, axis=-1)          # (T, NFFT) f32
    framesw = (frames * jnp.asarray(_HANN)[None, :]).reshape(n_frames, RATIO, HOP)
    nblocks = n_frames + RATIO - 1
    acc = jnp.zeros((RATIO, nblocks, HOP), jnp.float32)
    for k in range(RATIO):                                 # 4 static updates
        acc = acc.at[k, k:k + n_frames].set(framesw[:, k, :])
    ola = acc.sum(axis=0).reshape(-1)                      # (nblocks*HOP,)
    n = min(length, nblocks * HOP)
    out = jnp.zeros((length,), jnp.float32).at[:n].set(ola[:n])
    return out / _ola_window_sq(n_frames, length)


def make_bark_matrices():
    """Deterministic hz<->bark mapping + spreading matrices, lane-dense padded."""
    freqs = np.arange(F_BINS) * (SR / NFFT)
    bark = 13.0 * np.arctan(0.00076 * freqs) + 3.5 * np.arctan((freqs / 7500.0) ** 2)
    band = np.clip((bark / (bark[-1] + 1e-6) * NB_BARK).astype(np.int32),
                   0, NB_BARK - 1)
    w_h2b = (np.arange(NB_BARK)[:, None] == band[None, :]).astype(np.float32)  # (NB, F)
    d = np.abs(np.arange(NB_BARK)[:, None] - np.arange(NB_BARK)[None, :])
    spread = 10.0 ** (-2.5 * d.astype(np.float32))
    spread = spread / spread.sum(axis=1, keepdims=True)
    thr_scale = 10.0 ** (THR_OFFSET_DB / 10.0)

    # fused [hz->bark | spreading-threshold] weights, padded rows F_BINS..F_PAD = 0
    w_bark_thr = np.zeros((F_PAD, 2 * NB_BARK), np.float32)
    w_bark_thr[:F_BINS, :NB_BARK] = w_h2b.T
    w_bark_thr[:F_BINS, NB_BARK:] = (spread @ w_h2b).T * thr_scale
    # bark -> hz expansion, padded cols = 0
    w_b2h = np.zeros((NB_BARK, F_PAD), np.float32)
    w_b2h[:, :F_BINS] = w_h2b
    return jnp.asarray(w_bark_thr), jnp.asarray(w_b2h)


def make_mlp_params():
    """Synthetic gain-MLP weights packed into one (120, H) VMEM-friendly buffer."""
    k1, k2 = jax.random.split(jax.random.PRNGKey(42))
    d_in = 3 * NB_BARK
    w1 = jax.random.normal(k1, (d_in, EMB_HIDDEN), jnp.float32) / math.sqrt(d_in)
    b1 = jnp.zeros((EMB_HIDDEN,), jnp.float32)
    w2 = jax.random.normal(k2, (EMB_HIDDEN, NB_BARK), jnp.float32) / math.sqrt(EMB_HIDDEN)
    b2 = jnp.zeros((NB_BARK,), jnp.float32)
    buf = jnp.zeros((_MLP_ROWS, EMB_HIDDEN), jnp.float32)
    buf = buf.at[_W1_ROW:_W1_ROW + d_in].set(w1)
    buf = buf.at[_B1_ROW].set(b1)
    buf = buf.at[_W2_ROW:_W2_ROW + EMB_HIDDEN, :NB_BARK].set(w2)
    buf = buf.at[_B2_ROW, :NB_BARK].set(b2)
    return buf


# ----------------------------- forward ---------------------------------------
@jax.jit
def model_wrapper_forward(music_waveform, noise_waveform, w_bark_thr, w_b2h, w_mlp):
    music = music_waveform[0]                              # batch 1, squeeze
    noise = noise_waveform[0]
    length = music.shape[-1]

    m_re, m_im = stft_real_imag(music)                     # (T, F_BINS)
    n_re, n_im = stft_real_imag(noise)
    T = m_re.shape[0]
    Tp = -(-T // 8) * 8                                    # round up to sublane tile

    def _pad(x):                                           # (T,129) -> (Tp, F_PAD)
        return jnp.pad(x, ((0, Tp - T), (0, F_PAD - F_BINS)))

    # single stacked STFT input: [music_re ; noise_re ; music_im ; noise_im]
    stft_buf = jnp.concatenate([_pad(m_re), _pad(n_re), _pad(m_im), _pad(n_im)],
                               axis=0)                     # (4Tp, F_PAD)

    # TODO(synk): exact smoothing_gains formula unavailable; first-order
    # attack/release smoother with alpha = exp(-hop / (tau * sr)).
    alpha_attack = math.exp(-HOP / (TAU_ATTACK * SR))
    alpha_release = math.exp(-HOP / (TAU_RELEASE * SR))

    kernel = functools.partial(fused_kernel, n_frames=T,
                               alpha_attack=alpha_attack,
                               alpha_release=alpha_release)
    big, gm = pl.pallas_call(
        kernel,
        out_shape=(jax.ShapeDtypeStruct((3 * Tp, F_PAD), jnp.float32),   # re|im|filter
                   jax.ShapeDtypeStruct((Tp, 2 * NB_BARK), jnp.float32)),  # gains|mask
        in_specs=[_vmem_spec()] * 4,
        out_specs=(_vmem_spec(), _vmem_spec()),
    )(stft_buf, w_bark_thr, w_b2h, w_mlp)

    new_re = big[0:T, 0:F_BINS]
    new_im = big[Tp:Tp + T, 0:F_BINS]
    target_filter = big[2 * Tp:2 * Tp + T, 0:F_BINS]       # (T, F_BINS)
    gains_sm = gm[0:T, 0:NB_BARK]                          # (T, NB)
    threshold_mask = gm[0:T, NB_BARK:2 * NB_BARK]          # (T, NB)

    new_music_waveform = istft_real_imag(new_re, new_im, length)
    return new_music_waveform, gains_sm, target_filter, threshold_mask


# ----------------------------- main -------------------------------------------
if __name__ == "__main__":
    key = jax.random.PRNGKey(0)
    k_music, k_noise = jax.random.split(key)
    samples = 2048
    music_waveform = 0.1 * jax.random.normal(k_music, (1, samples), jnp.float32)
    noise_waveform = 0.05 * jax.random.normal(k_noise, (1, samples), jnp.float32)

    w_bark_thr, w_b2h = make_bark_matrices()
    w_mlp = make_mlp_params()

    out, gains, filt, mask = model_wrapper_forward(
        music_waveform, noise_waveform, w_bark_thr, w_b2h, w_mlp)
    jax.block_until_ready(out)

    assert out.shape == (samples,)
    assert gains.shape[-1] == NB_BARK
    assert filt.shape[-1] == F_BINS
    assert mask.shape[-1] == NB_BARK
    assert bool(jnp.all(jnp.isfinite(out)))
    assert bool(jnp.all(jnp.isfinite(filt)))
    print("KERNEL_OK")
</pallas_src>

<mosaic_0001>
module attributes {stable_mosaic.version = 11 : i64} {
  func.func @fused_kernel(%arg0: memref<128x256xf32, #tpu.memory_space<vmem>>, %arg1: memref<256x48xf32, #tpu.memory_space<vmem>>, %arg2: memref<24x256xf32, #tpu.memory_space<vmem>>, %arg3: memref<120x32xf32, #tpu.memory_space<vmem>>, %arg4: memref<96x256xf32, #tpu.memory_space<vmem>>, %arg5: memref<32x48xf32, #tpu.memory_space<vmem>>) attributes {dimension_semantics = [], scalar_prefetch = 0 : i64, scratch_operands = 0 : i64, tpu.core_type = #tpu.core_type<tc>} {
    %c0 = arith.constant 0 : index
    %c0_0 = arith.constant 0 : index
    %0 = vector.load %arg0[%c0, %c0_0] : memref<128x256xf32, #tpu.memory_space<vmem>>, vector<128x256xf32>
    %1 = vector.extract_strided_slice %0 {offsets = [0, 0], sizes = [64, 256], strides = [1, 1]} : vector<128x256xf32> to vector<64x256xf32>
    %2 = vector.extract_strided_slice %0 {offsets = [64, 0], sizes = [64, 256], strides = [1, 1]} : vector<128x256xf32> to vector<64x256xf32>
    %3 = arith.mulf %1, %1 : vector<64x256xf32>
    %4 = arith.mulf %2, %2 : vector<64x256xf32>
    %5 = arith.addf %3, %4 : vector<64x256xf32>
    %c0_1 = arith.constant 0 : index
    %c0_2 = arith.constant 0 : index
    %6 = vector.load %arg1[%c0_1, %c0_2] : memref<256x48xf32, #tpu.memory_space<vmem>>, vector<256x48xf32>
    %cst = arith.constant dense<0.000000e+00> : vector<64x48xf32>
    %7 = tpu.matmul %5, %6, %cst {dimension_numbers = #tpu.dot_dimension_numbers<[1], [0], [0], [1], [0, 0, 1, 1], [], []>} : vector<64x256xf32>, vector<256x48xf32>, vector<64x48xf32> -> vector<64x48xf32>
    %cst_3 = arith.constant 9.99999996E-13 : f32
    %8 = vector.broadcast %cst_3 : f32 to vector<64x48xf32>
    %9 = arith.addf %7, %8 : vector<64x48xf32>
    %10 = math.log %9 : vector<64x48xf32>
    %cst_4 = arith.constant 4.34294462 : f32
    %11 = vector.broadcast %cst_4 : f32 to vector<64x48xf32>
    %12 = arith.mulf %11, %10 : vector<64x48xf32>
    %13 = vector.extract_strided_slice %12 {offsets = [0, 0], sizes = [32, 24], strides = [1, 1]} : vector<64x48xf32> to vector<32x24xf32>
    %14 = vector.extract_strided_slice %12 {offsets = [0, 24], sizes = [32, 24], strides = [1, 1]} : vector<64x48xf32> to vector<32x24xf32>
    %15 = vector.extract_strided_slice %12 {offsets = [32, 0], sizes = [32, 24], strides = [1, 1]} : vector<64x48xf32> to vector<32x24xf32>
    %16 = arith.cmpf ogt, %15, %14 : vector<32x24xf32>
    %cst_5 = arith.constant 1.000000e+00 : f32
    %cst_6 = arith.constant 0.000000e+00 : f32
    %17 = vector.broadcast %cst_5 : f32 to vector<32x24xf32>
    %18 = vector.broadcast %cst_6 : f32 to vector<32x24xf32>
    %19 = arith.select %16, %17, %18 : vector<32x24xi1>, vector<32x24xf32>
    %c0_7 = arith.constant 0 : index
    %c0_8 = arith.constant 0 : index
    %20 = vector.load %arg3[%c0_7, %c0_8] : memref<120x32xf32, #tpu.memory_space<vmem>>, vector<120x32xf32>
    %21 = vector.extract_strided_slice %20 {offsets = [0, 0], sizes = [24, 32], strides = [1, 1]} : vector<120x32xf32> to vector<24x32xf32>
    %22 = vector.extract_strided_slice %20 {offsets = [24, 0], sizes = [24, 32], strides = [1, 1]} : vector<120x32xf32> to vector<24x32xf32>
    %23 = vector.extract_strided_slice %20 {offsets = [48, 0], sizes = [24, 32], strides = [1, 1]} : vector<120x32xf32> to vector<24x32xf32>
    %24 = vector.extract_strided_slice %20 {offsets = [72, 0], sizes = [1, 32], strides = [1, 1]} : vector<120x32xf32> to vector<1x32xf32>
    %25 = vector.extract_strided_slice %20 {offsets = [80, 0], sizes = [32, 24], strides = [1, 1]} : vector<120x32xf32> to vector<32x24xf32>
    %26 = vector.extract_strided_slice %20 {offsets = [112, 0], sizes = [1, 24], strides = [1, 1]} : vector<120x32xf32> to vector<1x24xf32>
    %cst_9 = arith.constant dense<0.000000e+00> : vector<32x32xf32>
    %27 = tpu.matmul %13, %21, %cst_9 {dimension_numbers = #tpu.dot_dimension_numbers<[1], [0], [0], [1], [0, 0, 1, 1], [], []>} : vector<32x24xf32>, vector<24x32xf32>, vector<32x32xf32> -> vector<32x32xf32>
    %cst_10 = arith.constant dense<0.000000e+00> : vector<32x32xf32>
    %28 = tpu.matmul %15, %22, %cst_10 {dimension_numbers = #tpu.dot_dimension_numbers<[1], [0], [0], [1], [0, 0, 1, 1], [], []>} : vector<32x24xf32>, vector<24x32xf32>, vector<32x32xf32> -> vector<32x32xf32>
    %29 = arith.addf %27, %28 : vector<32x32xf32>
    %cst_11 = arith.constant dense<0.000000e+00> : vector<32x32xf32>
    %30 = tpu.matmul %14, %23, %cst_11 {dimension_numbers = #tpu.dot_dimension_numbers<[1], [0], [0], [1], [0, 0, 1, 1], [], []>} : vector<32x24xf32>, vector<24x32xf32>, vector<32x32xf32> -> vector<32x32xf32>
    %31 = arith.addf %29, %30 : vector<32x32xf32>
    %32 = vector.broadcast %24 : vector<1x32xf32> to vector<32x32xf32>
    %33 = arith.addf %31, %32 : vector<32x32xf32>
    %34 = math.tanh %33 : vector<32x32xf32>
    %cst_12 = arith.constant dense<0.000000e+00> : vector<32x24xf32>
    %35 = tpu.matmul %34, %25, %cst_12 {dimension_numbers = #tpu.dot_dimension_numbers<[1], [0], [0], [1], [0, 0, 1, 1], [], []>} : vector<32x32xf32>, vector<32x24xf32>, vector<32x24xf32> -> vector<32x24xf32>
    %36 = vector.broadcast %26 : vector<1x24xf32> to vector<32x24xf32>
    %37 = arith.addf %35, %36 : vector<32x24xf32>
    %cst_13 = arith.constant -3.000000e+01 : f32
    %cst_14 = arith.constant 1.200000e+01 : f32
    %38 = vector.broadcast %cst_13 : f32 to vector<32x24xf32>
    %39 = arith.maximumf %38, %37 : vector<32x24xf32>
    %40 = vector.broadcast %cst_14 : f32 to vector<32x24xf32>
    %41 = arith.minimumf %40, %39 : vector<32x24xf32>
    %42 = vector.extract_strided_slice %41 {offsets = [0, 0], sizes = [1, 24], strides = [1, 1]} : vector<32x24xf32> to vector<1x24xf32>
    %43 = vector.extract_strided_slice %41 {offsets = [0, 0], sizes = [1, 24], strides = [1, 1]} : vector<32x24xf32> to vector<1x24xf32>
    %44 = arith.cmpf olt, %43, %42 : vector<1x24xf32>
    %cst_15 = arith.constant 0.984127342 : f32
    %cst_16 = arith.constant 0.984127342 : f32
    %45 = vector.broadcast %cst_15 : f32 to vector<1x24xf32>
    %46 = vector.broadcast %cst_16 : f32 to vector<1x24xf32>
    %47 = arith.select %44, %45, %46 : vector<1x24xi1>, vector<1x24xf32>
    %48 = arith.mulf %47, %42 : vector<1x24xf32>
    %cst_17 = arith.constant 1.000000e+00 : f32
    %49 = vector.broadcast %cst_17 : f32 to vector<1x24xf32>
    %50 = arith.subf %49, %47 : vector<1x24xf32>
    %51 = arith.mulf %50, %43 : vector<1x24xf32>
    %52 = arith.addf %48, %51 : vector<1x24xf32>
    %53 = vector.extract_strided_slice %41 {offsets = [1, 0], sizes = [1, 24], strides = [1, 1]} : vector<32x24xf32> to vector<1x24xf32>
    %54 = arith.cmpf olt, %53, %52 : vector<1x24xf32>
    %cst_18 = arith.constant 0.984127342 : f32
    %cst_19 = arith.constant 0.984127342 : f32
    %55 = vector.broadcast %cst_18 : f32 to vector<1x24xf32>
    %56 = vector.broadcast %cst_19 : f32 to vector<1x24xf32>
    %57 = arith.select %54, %55, %56 : vector<1x24xi1>, vector<1x24xf32>
    %58 = arith.mulf %57, %52 : vector<1x24xf32>
    %cst_20 = arith.constant 1.000000e+00 : f32
    %59 = vector.broadcast %cst_20 : f32 to vector<1x24xf32>
    %60 = arith.subf %59, %57 : vector<1x24xf32>
    %61 = arith.mulf %60, %53 : vector<1x24xf32>
    %62 = arith.addf %58, %61 : vector<1x24xf32>
    %63 = vector.extract_strided_slice %41 {offsets = [2, 0], sizes = [1, 24], strides = [1, 1]} : vector<32x24xf32> to vector<1x24xf32>
    %64 = arith.cmpf olt, %63, %62 : vector<1x24xf32>
    %cst_21 = arith.constant 0.984127342 : f32
    %cst_22 = arith.constant 0.984127342 : f32
    %65 = vector.broadcast %cst_21 : f32 to vector<1x24xf32>
    %66 = vector.broadcast %cst_22 : f32 to vector<1x24xf32>
    %67 = arith.select %64, %65, %66 : vector<1x24xi1>, vector<1x24xf32>
    %68 = arith.mulf %67, %62 : vector<1x24xf32>
    %cst_23 = arith.constant 1.000000e+00 : f32
    %69 = vector.broadcast %cst_23 : f32 to vector<1x24xf32>
    %70 = arith.subf %69, %67 : vector<1x24xf32>
    %71 = arith.mulf %70, %63 : vector<1x24xf32>
    %72 = arith.addf %68, %71 : vector<1x24xf32>
    %73 = vector.extract_strided_slice %41 {offsets = [3, 0], sizes = [1, 24], strides = [1, 1]} : vector<32x24xf32> to vector<1x24xf32>
    %74 = arith.cmpf olt, %73, %72 : vector<1x24xf32>
    %cst_24 = arith.constant 0.984127342 : f32
    %cst_25 = arith.constant 0.984127342 : f32
    %75 = vector.broadcast %cst_24 : f32 to vector<1x24xf32>
    %76 = vector.broadcast %cst_25 : f32 to vector<1x24xf32>
    %77 = arith.select %74, %75, %76 : vector<1x24xi1>, vector<1x24xf32>
    %78 = arith.mulf %77, %72 : vector<1x24xf32>
    %cst_26 = arith.constant 1.000000e+00 : f32
    %79 = vector.broadcast %cst_26 : f32 to vector<1x24xf32>
    %80 = arith.subf %79, %77 : vector<1x24xf32>
    %81 = arith.mulf %80, %73 : vector<1x24xf32>
    %82 = arith.addf %78, %81 : vector<1x24xf32>
    %83 = vector.extract_strided_slice %41 {offsets = [4, 0], sizes = [1, 24], strides = [1, 1]} : vector<32x24xf32> to vector<1x24xf32>
    %84 = arith.cmpf olt, %83, %82 : vector<1x24xf32>
    %cst_27 = arith.constant 0.984127342 : f32
    %cst_28 = arith.constant 0.984127342 : f32
    %85 = vector.broadcast %cst_27 : f32 to vector<1x24xf32>
    %86 = vector.broadcast %cst_28 : f32 to vector<1x24xf32>
    %87 = arith.select %84, %85, %86 : vector<1x24xi1>, vector<1x24xf32>
    %88 = arith.mulf %87, %82 : vector<1x24xf32>
    %cst_29 = arith.constant 1.000000e+00 : f32
    %89 = vector.broadcast %cst_29 : f32 to vector<1x24xf32>
    %90 = arith.subf %89, %87 : vector<1x24xf32>
    %91 = arith.mulf %90, %83 : vector<1x24xf32>
    %92 = arith.addf %88, %91 : vector<1x24xf32>
    %93 = vector.extract_strided_slice %41 {offsets = [5, 0], sizes = [1, 24], strides = [1, 1]} : vector<32x24xf32> to vector<1x24xf32>
    %94 = arith.cmpf olt, %93, %92 : vector<1x24xf32>
    %cst_30 = arith.constant 0.984127342 : f32
    %cst_31 = arith.constant 0.984127342 : f32
    %95 = vector.broadcast %cst_30 : f32 to vector<1x24xf32>
    %96 = vector.broadcast %cst_31 : f32 to vector<1x24xf32>
    %97 = arith.select %94, %95, %96 : vector<1x24xi1>, vector<1x24xf32>
    %98 = arith.mulf %97, %92 : vector<1x24xf32>
    %cst_32 = arith.constant 1.000000e+00 : f32
    %99 = vector.broadcast %cst_32 : f32 to vector<1x24xf32>
    %100 = arith.subf %99, %97 : vector<1x24xf32>
    %101 = arith.mulf %100, %93 : vector<1x24xf32>
    %102 = arith.addf %98, %101 : vector<1x24xf32>
    %103 = vector.extract_strided_slice %41 {offsets = [6, 0], sizes = [1, 24], strides = [1, 1]} : vector<32x24xf32> to vector<1x24xf32>
    %104 = arith.cmpf olt, %103, %102 : vector<1x24xf32>
    %cst_33 = arith.constant 0.984127342 : f32
    %cst_34 = arith.constant 0.984127342 : f32
    %105 = vector.broadcast %cst_33 : f32 to vector<1x24xf32>
    %106 = vector.broadcast %cst_34 : f32 to vector<1x24xf32>
    %107 = arith.select %104, %105, %106 : vector<1x24xi1>, vector<1x24xf32>
    %108 = arith.mulf %107, %102 : vector<1x24xf32>
    %cst_35 = arith.constant 1.000000e+00 : f32
    %109 = vector.broadcast %cst_35 : f32 to vector<1x24xf32>
    %110 = arith.subf %109, %107 : vector<1x24xf32>
    %111 = arith.mulf %110, %103 : vector<1x24xf32>
    %112 = arith.addf %108, %111 : vector<1x24xf32>
    %113 = vector.extract_strided_slice %41 {offsets = [7, 0], sizes = [1, 24], strides = [1, 1]} : vector<32x24xf32> to vector<1x24xf32>
    %114 = arith.cmpf olt, %113, %112 : vector<1x24xf32>
    %cst_36 = arith.constant 0.984127342 : f32
    %cst_37 = arith.constant 0.984127342 : f32
    %115 = vector.broadcast %cst_36 : f32 to vector<1x24xf32>
    %116 = vector.broadcast %cst_37 : f32 to vector<1x24xf32>
    %117 = arith.select %114, %115, %116 : vector<1x24xi1>, vector<1x24xf32>
    %118 = arith.mulf %117, %112 : vector<1x24xf32>
    %cst_38 = arith.constant 1.000000e+00 : f32
    %119 = vector.broadcast %cst_38 : f32 to vector<1x24xf32>
    %120 = arith.subf %119, %117 : vector<1x24xf32>
    %121 = arith.mulf %120, %113 : vector<1x24xf32>
    %122 = arith.addf %118, %121 : vector<1x24xf32>
    %123 = vector.extract_strided_slice %41 {offsets = [8, 0], sizes = [1, 24], strides = [1, 1]} : vector<32x24xf32> to vector<1x24xf32>
    %124 = arith.cmpf olt, %123, %122 : vector<1x24xf32>
    %cst_39 = arith.constant 0.984127342 : f32
    %cst_40 = arith.constant 0.984127342 : f32
    %125 = vector.broadcast %cst_39 : f32 to vector<1x24xf32>
    %126 = vector.broadcast %cst_40 : f32 to vector<1x24xf32>
    %127 = arith.select %124, %125, %126 : vector<1x24xi1>, vector<1x24xf32>
    %128 = arith.mulf %127, %122 : vector<1x24xf32>
    %cst_41 = arith.constant 1.000000e+00 : f32
    %129 = vector.broadcast %cst_41 : f32 to vector<1x24xf32>
    %130 = arith.subf %129, %127 : vector<1x24xf32>
    %131 = arith.mulf %130, %123 : vector<1x24xf32>
    %132 = arith.addf %128, %131 : vector<1x24xf32>
    %133 = vector.extract_strided_slice %41 {offsets = [9, 0], sizes = [1, 24], strides = [1, 1]} : vector<32x24xf32> to vector<1x24xf32>
    %134 = arith.cmpf olt, %133, %132 : vector<1x24xf32>
    %cst_42 = arith.constant 0.984127342 : f32
    %cst_43 = arith.constant 0.984127342 : f32
    %135 = vector.broadcast %cst_42 : f32 to vector<1x24xf32>
    %136 = vector.broadcast %cst_43 : f32 to vector<1x24xf32>
    %137 = arith.select %134, %135, %136 : vector<1x24xi1>, vector<1x24xf32>
    %138 = arith.mulf %137, %132 : vector<1x24xf32>
    %cst_44 = arith.constant 1.000000e+00 : f32
    %139 = vector.broadcast %cst_44 : f32 to vector<1x24xf32>
    %140 = arith.subf %139, %137 : vector<1x24xf32>
    %141 = arith.mulf %140, %133 : vector<1x24xf32>
    %142 = arith.addf %138, %141 : vector<1x24xf32>
    %143 = vector.extract_strided_slice %41 {offsets = [10, 0], sizes = [1, 24], strides = [1, 1]} : vector<32x24xf32> to vector<1x24xf32>
    %144 = arith.cmpf olt, %143, %142 : vector<1x24xf32>
    %cst_45 = arith.constant 0.984127342 : f32
    %cst_46 = arith.constant 0.984127342 : f32
    %145 = vector.broadcast %cst_45 : f32 to vector<1x24xf32>
    %146 = vector.broadcast %cst_46 : f32 to vector<1x24xf32>
    %147 = arith.select %144, %145, %146 : vector<1x24xi1>, vector<1x24xf32>
    %148 = arith.mulf %147, %142 : vector<1x24xf32>
    %cst_47 = arith.constant 1.000000e+00 : f32
    %149 = vector.broadcast %cst_47 : f32 to vector<1x24xf32>
    %150 = arith.subf %149, %147 : vector<1x24xf32>
    %151 = arith.mulf %150, %143 : vector<1x24xf32>
    %152 = arith.addf %148, %151 : vector<1x24xf32>
    %153 = vector.extract_strided_slice %41 {offsets = [11, 0], sizes = [1, 24], strides = [1, 1]} : vector<32x24xf32> to vector<1x24xf32>
    %154 = arith.cmpf olt, %153, %152 : vector<1x24xf32>
    %cst_48 = arith.constant 0.984127342 : f32
    %cst_49 = arith.constant 0.984127342 : f32
    %155 = vector.broadcast %cst_48 : f32 to vector<1x24xf32>
    %156 = vector.broadcast %cst_49 : f32 to vector<1x24xf32>
    %157 = arith.select %154, %155, %156 : vector<1x24xi1>, vector<1x24xf32>
    %158 = arith.mulf %157, %152 : vector<1x24xf32>
    %cst_50 = arith.constant 1.000000e+00 : f32
    %159 = vector.broadcast %cst_50 : f32 to vector<1x24xf32>
    %160 = arith.subf %159, %157 : vector<1x24xf32>
    %161 = arith.mulf %160, %153 : vector<1x24xf32>
    %162 = arith.addf %158, %161 : vector<1x24xf32>
    %163 = vector.extract_strided_slice %41 {offsets = [12, 0], sizes = [1, 24], strides = [1, 1]} : vector<32x24xf32> to vector<1x24xf32>
    %164 = arith.cmpf olt, %163, %162 : vector<1x24xf32>
    %cst_51 = arith.constant 0.984127342 : f32
    %cst_52 = arith.constant 0.984127342 : f32
    %165 = vector.broadcast %cst_51 : f32 to vector<1x24xf32>
    %166 = vector.broadcast %cst_52 : f32 to vector<1x24xf32>
    %167 = arith.select %164, %165, %166 : vector<1x24xi1>, vector<1x24xf32>
    %168 = arith.mulf %167, %162 : vector<1x24xf32>
    %cst_53 = arith.constant 1.000000e+00 : f32
    %169 = vector.broadcast %cst_53 : f32 to vector<1x24xf32>
    %170 = arith.subf %169, %167 : vector<1x24xf32>
    %171 = arith.mulf %170, %163 : vector<1x24xf32>
    %172 = arith.addf %168, %171 : vector<1x24xf32>
    %173 = vector.extract_strided_slice %41 {offsets = [13, 0], sizes = [1, 24], strides = [1, 1]} : vector<32x24xf32> to vector<1x24xf32>
    %174 = arith.cmpf olt, %173, %172 : vector<1x24xf32>
    %cst_54 = arith.constant 0.984127342 : f32
    %cst_55 = arith.constant 0.984127342 : f32
    %175 = vector.broadcast %cst_54 : f32 to vector<1x24xf32>
    %176 = vector.broadcast %cst_55 : f32 to vector<1x24xf32>
    %177 = arith.select %174, %175, %176 : vector<1x24xi1>, vector<1x24xf32>
    %178 = arith.mulf %177, %172 : vector<1x24xf32>
    %cst_56 = arith.constant 1.000000e+00 : f32
    %179 = vector.broadcast %cst_56 : f32 to vector<1x24xf32>
    %180 = arith.subf %179, %177 : vector<1x24xf32>
    %181 = arith.mulf %180, %173 : vector<1x24xf32>
    %182 = arith.addf %178, %181 : vector<1x24xf32>
    %183 = vector.extract_strided_slice %41 {offsets = [14, 0], sizes = [1, 24], strides = [1, 1]} : vector<32x24xf32> to vector<1x24xf32>
    %184 = arith.cmpf olt, %183, %182 : vector<1x24xf32>
    %cst_57 = arith.constant 0.984127342 : f32
    %cst_58 = arith.constant 0.984127342 : f32
    %185 = vector.broadcast %cst_57 : f32 to vector<1x24xf32>
    %186 = vector.broadcast %cst_58 : f32 to vector<1x24xf32>
    %187 = arith.select %184, %185, %186 : vector<1x24xi1>, vector<1x24xf32>
    %188 = arith.mulf %187, %182 : vector<1x24xf32>
    %cst_59 = arith.constant 1.000000e+00 : f32
    %189 = vector.broadcast %cst_59 : f32 to vector<1x24xf32>
    %190 = arith.subf %189, %187 : vector<1x24xf32>
    %191 = arith.mulf %190, %183 : vector<1x24xf32>
    %192 = arith.addf %188, %191 : vector<1x24xf32>
    %193 = vector.extract_strided_slice %41 {offsets = [15, 0], sizes = [1, 24], strides = [1, 1]} : vector<32x24xf32> to vector<1x24xf32>
    %194 = arith.cmpf olt, %193, %192 : vector<1x24xf32>
    %cst_60 = arith.constant 0.984127342 : f32
    %cst_61 = arith.constant 0.984127342 : f32
    %195 = vector.broadcast %cst_60 : f32 to vector<1x24xf32>
    %196 = vector.broadcast %cst_61 : f32 to vector<1x24xf32>
    %197 = arith.select %194, %195, %196 : vector<1x24xi1>, vector<1x24xf32>
    %198 = arith.mulf %197, %192 : vector<1x24xf32>
    %cst_62 = arith.constant 1.000000e+00 : f32
    %199 = vector.broadcast %cst_62 : f32 to vector<1x24xf32>
    %200 = arith.subf %199, %197 : vector<1x24xf32>
    %201 = arith.mulf %200, %193 : vector<1x24xf32>
    %202 = arith.addf %198, %201 : vector<1x24xf32>
    %203 = vector.extract_strided_slice %41 {offsets = [16, 0], sizes = [1, 24], strides = [1, 1]} : vector<32x24xf32> to vector<1x24xf32>
    %204 = arith.cmpf olt, %203, %202 : vector<1x24xf32>
    %cst_63 = arith.constant 0.984127342 : f32
    %cst_64 = arith.constant 0.984127342 : f32
    %205 = vector.broadcast %cst_63 : f32 to vector<1x24xf32>
    %206 = vector.broadcast %cst_64 : f32 to vector<1x24xf32>
    %207 = arith.select %204, %205, %206 : vector<1x24xi1>, vector<1x24xf32>
    %208 = arith.mulf %207, %202 : vector<1x24xf32>
    %cst_65 = arith.constant 1.000000e+00 : f32
    %209 = vector.broadcast %cst_65 : f32 to vector<1x24xf32>
    %210 = arith.subf %209, %207 : vector<1x24xf32>
    %211 = arith.mulf %210, %203 : vector<1x24xf32>
    %212 = arith.addf %208, %211 : vector<1x24xf32>
    %213 = vector.extract_strided_slice %41 {offsets = [17, 0], sizes = [1, 24], strides = [1, 1]} : vector<32x24xf32> to vector<1x24xf32>
    %214 = arith.cmpf olt, %213, %212 : vector<1x24xf32>
    %cst_66 = arith.constant 0.984127342 : f32
    %cst_67 = arith.constant 0.984127342 : f32
    %215 = vector.broadcast %cst_66 : f32 to vector<1x24xf32>
    %216 = vector.broadcast %cst_67 : f32 to vector<1x24xf32>
    %217 = arith.select %214, %215, %216 : vector<1x24xi1>, vector<1x24xf32>
    %218 = arith.mulf %217, %212 : vector<1x24xf32>
    %cst_68 = arith.constant 1.000000e+00 : f32
    %219 = vector.broadcast %cst_68 : f32 to vector<1x24xf32>
    %220 = arith.subf %219, %217 : vector<1x24xf32>
    %221 = arith.mulf %220, %213 : vector<1x24xf32>
    %222 = arith.addf %218, %221 : vector<1x24xf32>
    %223 = vector.extract_strided_slice %41 {offsets = [18, 0], sizes = [1, 24], strides = [1, 1]} : vector<32x24xf32> to vector<1x24xf32>
    %224 = arith.cmpf olt, %223, %222 : vector<1x24xf32>
    %cst_69 = arith.constant 0.984127342 : f32
    %cst_70 = arith.constant 0.984127342 : f32
    %225 = vector.broadcast %cst_69 : f32 to vector<1x24xf32>
    %226 = vector.broadcast %cst_70 : f32 to vector<1x24xf32>
    %227 = arith.select %224, %225, %226 : vector<1x24xi1>, vector<1x24xf32>
    %228 = arith.mulf %227, %222 : vector<1x24xf32>
    %cst_71 = arith.constant 1.000000e+00 : f32
    %229 = vector.broadcast %cst_71 : f32 to vector<1x24xf32>
    %230 = arith.subf %229, %227 : vector<1x24xf32>
    %231 = arith.mulf %230, %223 : vector<1x24xf32>
    %232 = arith.addf %228, %231 : vector<1x24xf32>
    %233 = vector.extract_strided_slice %41 {offsets = [19, 0], sizes = [1, 24], strides = [1, 1]} : vector<32x24xf32> to vector<1x24xf32>
    %234 = arith.cmpf olt, %233, %232 : vector<1x24xf32>
    %cst_72 = arith.constant 0.984127342 : f32
    %cst_73 = arith.constant 0.984127342 : f32
    %235 = vector.broadcast %cst_72 : f32 to vector<1x24xf32>
    %236 = vector.broadcast %cst_73 : f32 to vector<1x24xf32>
    %237 = arith.select %234, %235, %236 : vector<1x24xi1>, vector<1x24xf32>
    %238 = arith.mulf %237, %232 : vector<1x24xf32>
    %cst_74 = arith.constant 1.000000e+00 : f32
    %239 = vector.broadcast %cst_74 : f32 to vector<1x24xf32>
    %240 = arith.subf %239, %237 : vector<1x24xf32>
    %241 = arith.mulf %240, %233 : vector<1x24xf32>
    %242 = arith.addf %238, %241 : vector<1x24xf32>
    %243 = vector.extract_strided_slice %41 {offsets = [20, 0], sizes = [1, 24], strides = [1, 1]} : vector<32x24xf32> to vector<1x24xf32>
    %244 = arith.cmpf olt, %243, %242 : vector<1x24xf32>
    %cst_75 = arith.constant 0.984127342 : f32
    %cst_76 = arith.constant 0.984127342 : f32
    %245 = vector.broadcast %cst_75 : f32 to vector<1x24xf32>
    %246 = vector.broadcast %cst_76 : f32 to vector<1x24xf32>
    %247 = arith.select %244, %245, %246 : vector<1x24xi1>, vector<1x24xf32>
    %248 = arith.mulf %247, %242 : vector<1x24xf32>
    %cst_77 = arith.constant 1.000000e+00 : f32
    %249 = vector.broadcast %cst_77 : f32 to vector<1x24xf32>
    %250 = arith.subf %249, %247 : vector<1x24xf32>
    %251 = arith.mulf %250, %243 : vector<1x24xf32>
    %252 = arith.addf %248, %251 : vector<1x24xf32>
    %253 = vector.extract_strided_slice %41 {offsets = [21, 0], sizes = [1, 24], strides = [1, 1]} : vector<32x24xf32> to vector<1x24xf32>
    %254 = arith.cmpf olt, %253, %252 : vector<1x24xf32>
    %cst_78 = arith.constant 0.984127342 : f32
    %cst_79 = arith.constant 0.984127342 : f32
    %255 = vector.broadcast %cst_78 : f32 to vector<1x24xf32>
    %256 = vector.broadcast %cst_79 : f32 to vector<1x24xf32>
    %257 = arith.select %254, %255, %256 : vector<1x24xi1>, vector<1x24xf32>
    %258 = arith.mulf %257, %252 : vector<1x24xf32>
    %cst_80 = arith.constant 1.000000e+00 : f32
    %259 = vector.broadcast %cst_80 : f32 to vector<1x24xf32>
    %260 = arith.subf %259, %257 : vector<1x24xf32>
    %261 = arith.mulf %260, %253 : vector<1x24xf32>
    %262 = arith.addf %258, %261 : vector<1x24xf32>
    %263 = vector.extract_strided_slice %41 {offsets = [22, 0], sizes = [1, 24], strides = [1, 1]} : vector<32x24xf32> to vector<1x24xf32>
    %264 = arith.cmpf olt, %263, %262 : vector<1x24xf32>
    %cst_81 = arith.constant 0.984127342 : f32
    %cst_82 = arith.constant 0.984127342 : f32
    %265 = vector.broadcast %cst_81 : f32 to vector<1x24xf32>
    %266 = vector.broadcast %cst_82 : f32 to vector<1x24xf32>
    %267 = arith.select %264, %265, %266 : vector<1x24xi1>, vector<1x24xf32>
    %268 = arith.mulf %267, %262 : vector<1x24xf32>
    %cst_83 = arith.constant 1.000000e+00 : f32
    %269 = vector.broadcast %cst_83 : f32 to vector<1x24xf32>
    %270 = arith.subf %269, %267 : vector<1x24xf32>
    %271 = arith.mulf %270, %263 : vector<1x24xf32>
    %272 = arith.addf %268, %271 : vector<1x24xf32>
    %273 = vector.extract_strided_slice %41 {offsets = [23, 0], sizes = [1, 24], strides = [1, 1]} : vector<32x24xf32> to vector<1x24xf32>
    %274 = arith.cmpf olt, %273, %272 : vector<1x24xf32>
    %cst_84 = arith.constant 0.984127342 : f32
    %cst_85 = arith.constant 0.984127342 : f32
    %275 = vector.broadcast %cst_84 : f32 to vector<1x24xf32>
    %276 = vector.broadcast %cst_85 : f32 to vector<1x24xf32>
    %277 = arith.select %274, %275, %276 : vector<1x24xi1>, vector<1x24xf32>
    %278 = arith.mulf %277, %272 : vector<1x24xf32>
    %cst_86 = arith.constant 1.000000e+00 : f32
    %279 = vector.broadcast %cst_86 : f32 to vector<1x24xf32>
    %280 = arith.subf %279, %277 : vector<1x24xf32>
    %281 = arith.mulf %280, %273 : vector<1x24xf32>
    %282 = arith.addf %278, %281 : vector<1x24xf32>
    %283 = vector.extract_strided_slice %41 {offsets = [24, 0], sizes = [1, 24], strides = [1, 1]} : vector<32x24xf32> to vector<1x24xf32>
    %284 = arith.cmpf olt, %283, %282 : vector<1x24xf32>
    %cst_87 = arith.constant 0.984127342 : f32
    %cst_88 = arith.constant 0.984127342 : f32
    %285 = vector.broadcast %cst_87 : f32 to vector<1x24xf32>
    %286 = vector.broadcast %cst_88 : f32 to vector<1x24xf32>
    %287 = arith.select %284, %285, %286 : vector<1x24xi1>, vector<1x24xf32>
    %288 = arith.mulf %287, %282 : vector<1x24xf32>
    %cst_89 = arith.constant 1.000000e+00 : f32
    %289 = vector.broadcast %cst_89 : f32 to vector<1x24xf32>
    %290 = arith.subf %289, %287 : vector<1x24xf32>
    %291 = arith.mulf %290, %283 : vector<1x24xf32>
    %292 = arith.addf %288, %291 : vector<1x24xf32>
    %293 = vector.extract_strided_slice %41 {offsets = [25, 0], sizes = [1, 24], strides = [1, 1]} : vector<32x24xf32> to vector<1x24xf32>
    %294 = arith.cmpf olt, %293, %292 : vector<1x24xf32>
    %cst_90 = arith.constant 0.984127342 : f32
    %cst_91 = arith.constant 0.984127342 : f32
    %295 = vector.broadcast %cst_90 : f32 to vector<1x24xf32>
    %296 = vector.broadcast %cst_91 : f32 to vector<1x24xf32>
    %297 = arith.select %294, %295, %296 : vector<1x24xi1>, vector<1x24xf32>
    %298 = arith.mulf %297, %292 : vector<1x24xf32>
    %cst_92 = arith.constant 1.000000e+00 : f32
    %299 = vector.broadcast %cst_92 : f32 to vector<1x24xf32>
    %300 = arith.subf %299, %297 : vector<1x24xf32>
    %301 = arith.mulf %300, %293 : vector<1x24xf32>
    %302 = arith.addf %298, %301 : vector<1x24xf32>
    %303 = vector.extract_strided_slice %41 {offsets = [26, 0], sizes = [1, 24], strides = [1, 1]} : vector<32x24xf32> to vector<1x24xf32>
    %304 = arith.cmpf olt, %303, %302 : vector<1x24xf32>
    %cst_93 = arith.constant 0.984127342 : f32
    %cst_94 = arith.constant 0.984127342 : f32
    %305 = vector.broadcast %cst_93 : f32 to vector<1x24xf32>
    %306 = vector.broadcast %cst_94 : f32 to vector<1x24xf32>
    %307 = arith.select %304, %305, %306 : vector<1x24xi1>, vector<1x24xf32>
    %308 = arith.mulf %307, %302 : vector<1x24xf32>
    %cst_95 = arith.constant 1.000000e+00 : f32
    %309 = vector.broadcast %cst_95 : f32 to vector<1x24xf32>
    %310 = arith.subf %309, %307 : vector<1x24xf32>
    %311 = arith.mulf %310, %303 : vector<1x24xf32>
    %312 = arith.addf %308, %311 : vector<1x24xf32>
    %313 = vector.extract_strided_slice %41 {offsets = [27, 0], sizes = [1, 24], strides = [1, 1]} : vector<32x24xf32> to vector<1x24xf32>
    %314 = arith.cmpf olt, %313, %312 : vector<1x24xf32>
    %cst_96 = arith.constant 0.984127342 : f32
    %cst_97 = arith.constant 0.984127342 : f32
    %315 = vector.broadcast %cst_96 : f32 to vector<1x24xf32>
    %316 = vector.broadcast %cst_97 : f32 to vector<1x24xf32>
    %317 = arith.select %314, %315, %316 : vector<1x24xi1>, vector<1x24xf32>
    %318 = arith.mulf %317, %312 : vector<1x24xf32>
    %cst_98 = arith.constant 1.000000e+00 : f32
    %319 = vector.broadcast %cst_98 : f32 to vector<1x24xf32>
    %320 = arith.subf %319, %317 : vector<1x24xf32>
    %321 = arith.mulf %320, %313 : vector<1x24xf32>
    %322 = arith.addf %318, %321 : vector<1x24xf32>
    %323 = vector.extract_strided_slice %41 {offsets = [28, 0], sizes = [1, 24], strides = [1, 1]} : vector<32x24xf32> to vector<1x24xf32>
    %324 = arith.cmpf olt, %323, %322 : vector<1x24xf32>
    %cst_99 = arith.constant 0.984127342 : f32
    %cst_100 = arith.constant 0.984127342 : f32
    %325 = vector.broadcast %cst_99 : f32 to vector<1x24xf32>
    %326 = vector.broadcast %cst_100 : f32 to vector<1x24xf32>
    %327 = arith.select %324, %325, %326 : vector<1x24xi1>, vector<1x24xf32>
    %328 = arith.mulf %327, %322 : vector<1x24xf32>
    %cst_101 = arith.constant 1.000000e+00 : f32
    %329 = vector.broadcast %cst_101 : f32 to vector<1x24xf32>
    %330 = arith.subf %329, %327 : vector<1x24xf32>
    %331 = arith.mulf %330, %323 : vector<1x24xf32>
    %332 = arith.addf %328, %331 : vector<1x24xf32>
    %333 = vector.extract_strided_slice %41 {offsets = [29, 0], sizes = [1, 24], strides = [1, 1]} : vector<32x24xf32> to vector<1x24xf32>
    %334 = vector.extract_strided_slice %41 {offsets = [30, 0], sizes = [1, 24], strides = [1, 1]} : vector<32x24xf32> to vector<1x24xf32>
    %335 = vector.extract_strided_slice %41 {offsets = [31, 0], sizes = [1, 24], strides = [1, 1]} : vector<32x24xf32> to vector<1x24xf32>
    %336 = tpu.concatenate %52, %62, %72, %82, %92, %102, %112, %122, %132, %142, %152, %162, %172, %182, %192, %202 in 0 : vector<1x24xf32>, vector<1x24xf32>, vector<1x24xf32>, vector<1x24xf32>, vector<1x24xf32>, vector<1x24xf32>, vector<1x24xf32>, vector<1x24xf32>, vector<1x24xf32>, vector<1x24xf32>, vector<1x24xf32>, vector<1x24xf32>, vector<1x24xf32>, vector<1x24xf32>, vector<1x24xf32>, vector<1x24xf32> -> vector<16x24xf32>
    %337 = tpu.concatenate %212, %222, %232, %242, %252, %262, %272, %282, %292, %302, %312, %322, %332, %333, %334, %335 in 0 : vector<1x24xf32>, vector<1x24xf32>, vector<1x24xf32>, vector<1x24xf32>, vector<1x24xf32>, vector<1x24xf32>, vector<1x24xf32>, vector<1x24xf32>, vector<1x24xf32>, vector<1x24xf32>, vector<1x24xf32>, vector<1x24xf32>, vector<1x24xf32>, vector<1x24xf32>, vector<1x24xf32>, vector<1x24xf32> -> vector<16x24xf32>
    %338 = tpu.concatenate %336, %337 in 0 : vector<16x24xf32>, vector<16x24xf32> -> vector<32x24xf32>
    %339 = tpu.concatenate %338, %19 in 1 : vector<32x24xf32>, vector<32x24xf32> -> vector<32x48xf32>
    %c0_102 = arith.constant 0 : index
    %c0_103 = arith.constant 0 : index
    %340 = vector.load %arg5[%c0_102, %c0_103] : memref<32x48xf32, #tpu.memory_space<vmem>>, vector<32x48xf32>
    tpu.vector_store %arg5[%c0_102, %c0_103], %339 {strides = array<i32>} : memref<32x48xf32, #tpu.memory_space<vmem>>, vector<32x48xf32>,
    %c0_104 = arith.constant 0 : index
    %c0_105 = arith.constant 0 : index
    %341 = vector.load %arg2[%c0_104, %c0_105] : memref<24x256xf32, #tpu.memory_space<vmem>>, vector<24x256xf32>
    %cst_106 = arith.constant dense<0.000000e+00> : vector<32x256xf32>
    %342 = tpu.matmul %338, %341, %cst_106 {dimension_numbers = #tpu.dot_dimension_numbers<[1], [0], [0], [1], [0, 0, 1, 1], [], []>} : vector<32x24xf32>, vector<24x256xf32>, vector<32x256xf32> -> vector<32x256xf32>
    %cst_107 = arith.constant 0.115129255 : f32
    %343 = vector.broadcast %cst_107 : f32 to vector<32x256xf32>
    %344 = arith.mulf %342, %343 : vector<32x256xf32>
    %345 = math.exp %344 : vector<32x256xf32>
    %346 = vector.extract_strided_slice %1 {offsets = [0, 0], sizes = [32, 256], strides = [1, 1]} : vector<64x256xf32> to vector<32x256xf32>
    %347 = vector.extract_strided_slice %2 {offsets = [0, 0], sizes = [32, 256], strides = [1, 1]} : vector<64x256xf32> to vector<32x256xf32>
    %348 = arith.mulf %346, %345 : vector<32x256xf32>
    %c0_108 = arith.constant 0 : index
    %c0_109 = arith.constant 0 : index
    %349 = vector.load %arg4[%c0_108, %c0_109] : memref<96x256xf32, #tpu.memory_space<vmem>>, vector<32x256xf32>
    tpu.vector_store %arg4[%c0_108, %c0_109], %348 {strides = array<i32>} : memref<96x256xf32, #tpu.memory_space<vmem>>, vector<32x256xf32>,
    %350 = arith.mulf %347, %345 : vector<32x256xf32>
    %c32 = arith.constant 32 : index
    %c0_110 = arith.constant 0 : index
    %351 = vector.load %arg4[%c32, %c0_110] : memref<96x256xf32, #tpu.memory_space<vmem>>, vector<32x256xf32>
    tpu.vector_store %arg4[%c32, %c0_110], %350 {strides = array<i32>} : memref<96x256xf32, #tpu.memory_space<vmem>>, vector<32x256xf32>,
    %c64 = arith.constant 64 : index
    %c0_111 = arith.constant 0 : index
    %352 = vector.load %arg4[%c64, %c0_111] : memref<96x256xf32, #tpu.memory_space<vmem>>, vector<32x256xf32>
    tpu.vector_store %arg4[%c64, %c0_111], %345 {strides = array<i32>} : memref<96x256xf32, #tpu.memory_space<vmem>>, vector<32x256xf32>,
    return
  }
}

</mosaic_0001>

<llo_original>
// kernel: model_wrapper_forward.1
$region0: #{model_wrapper_forward.1}
  #allocation0 [shape = 'u32[]', space=smem, size = 0x4, offset = 0x4, fixed_abs, tag = 'smem constant byte address 0x4 - core index']
  #allocation1 [shape = 'u32[144,128]{1,0:T(1,128)}', space=vmem, size = 0x12000, scoped, tag = 'internal scratch']
  %s0 = inlined_call_operand.vmem [shape: f32[128,256], index: 0, kind: input, shape index: {}]
  %s1 = inlined_call_operand.vmem [shape: f32[256,48], index: 1, kind: input, shape index: {}]
  %s2 = inlined_call_operand.vmem [shape: f32[24,256], index: 2, kind: input, shape index: {}]
  %s3 = inlined_call_operand.vmem [shape: f32[120,32], index: 3, kind: input, shape index: {}]
  %s4 = inlined_call_operand.vmem [shape: f32[96,256], index: 4, kind: output, shape index: {0}]
  %s5 = inlined_call_operand.vmem [shape: f32[32,48], index: 5, kind: output, shape index: {1}]
  %6 = xla_tuple %s4, %s5
  %s7 = sld [smem:[#allocation0]]
  $region34: #{model_wrapper_forward.1} parent=0
    _
  %s9 = ssub.s32 1, %s7
  %s10 = scalar_select 0, %s9, %s7
  // Predicated region
  $region2: #{model_wrapper_forward.1} parent=0 // pred_check
    _
  $region3: #{model_wrapper_forward.1} parent=0 // pred_check_branch
    %12 = sbr.rel (0) target = $region5
  $region4: #{model_wrapper_forward.1} parent=0 // pred_region
    _
  $region5: #{model_wrapper_forward.1} parent=0 // pred_fallthru
    _
  // Predicated region
  $region6: #{model_wrapper_forward.1} parent=0 // pred_check
    _
  $region7: #{model_wrapper_forward.1} parent=0 // pred_check_branch
    %14 = sbr.rel (0) target = $region9
  $region8: #{model_wrapper_forward.1} parent=0 // pred_region
    _
  $region9: #{model_wrapper_forward.1} parent=0 // pred_fallthru
    _
  // Predicated region
  $region10: #{model_wrapper_forward.1} parent=0 // pred_check
    _
  $region11: #{model_wrapper_forward.1} parent=0 // pred_check_branch
    %16 = sbr.rel (0) target = $region13
  $region12: #{model_wrapper_forward.1} parent=0 // pred_region
    _
  $region13: #{model_wrapper_forward.1} parent=0 // pred_fallthru
    _
  // Predicated region
  $region14: #{model_wrapper_forward.1} parent=0 // pred_check
    _
  $region15: #{model_wrapper_forward.1} parent=0 // pred_check_branch
    %18 = sbr.rel (0) target = $region17
  $region16: #{model_wrapper_forward.1} parent=0 // pred_region
    _
  $region17: #{model_wrapper_forward.1} parent=0 // pred_fallthru
    _
  %v19 = vld [vmem:[%s0] sm:$0xff]
  %v20 = vld [vmem:[%s0 + $0x8] sm:$0xff]
  %v21 = vld [vmem:[%s0 + $0x10] sm:$0xff]
  %v22 = vld [vmem:[%s0 + $0x18] sm:$0xff]
  %v23 = vld [vmem:[%s0 + $0x20] sm:$0xff]
  %v24 = vld [vmem:[%s0 + $0x28] sm:$0xff]
  %v25 = vld [vmem:[%s0 + $0x30] sm:$0xff]
  %v26 = vld [vmem:[%s0 + $0x38] sm:$0xff]
  %v27 = vld [vmem:[%s0 + $0x40] sm:$0xff]
  %v28 = vld [vmem:[%s0 + $0x48] sm:$0xff]
  %v29 = vld [vmem:[%s0 + $0x50] sm:$0xff]
  %v30 = vld [vmem:[%s0 + $0x58] sm:$0xff]
  %v31 = vld [vmem:[%s0 + $0x60] sm:$0xff]
  %v32 = vld [vmem:[%s0 + $0x68] sm:$0xff]
  %v33 = vld [vmem:[%s0 + $0x70] sm:$0xff]
  %v34 = vld [vmem:[%s0 + $0x78] sm:$0xff]
  %v35 = vld [vmem:[%s0 + $0x80] sm:$0xff]
  %v36 = vld [vmem:[%s0 + $0x88] sm:$0xff]
  %v37 = vld [vmem:[%s0 + $0x90] sm:$0xff]
  %v38 = vld [vmem:[%s0 + $0x98] sm:$0xff]
  %v39 = vld [vmem:[%s0 + $0xa0] sm:$0xff]
  %v40 = vld [vmem:[%s0 + $0xa8] sm:$0xff]
  %v41 = vld [vmem:[%s0 + $0xb0] sm:$0xff]
  %v42 = vld [vmem:[%s0 + $0xb8] sm:$0xff]
  %v43 = vld [vmem:[%s0 + $0xc0] sm:$0xff]
  %v44 = vld [vmem:[%s0 + $0xc8] sm:$0xff]
  %v45 = vld [vmem:[%s0 + $0xd0] sm:$0xff]
  %v46 = vld [vmem:[%s0 + $0xd8] sm:$0xff]
  %v47 = vld [vmem:[%s0 + $0xe0] sm:$0xff]
  %v48 = vld [vmem:[%s0 + $0xe8] sm:$0xff]
  %v49 = vld [vmem:[%s0 + $0xf0] sm:$0xff]
  %v50 = vld [vmem:[%s0 + $0xf8] sm:$0xff]
  %v51 = vmul.f32 %v19, %v19
  %v52 = vmul.f32 %v20, %v20
  %v53 = vmul.f32 %v21, %v21
  %v54 = vmul.f32 %v22, %v22
  %v55 = vmul.f32 %v23, %v23
  %v56 = vmul.f32 %v24, %v24
  %v57 = vmul.f32 %v25, %v25
  %v58 = vmul.f32 %v26, %v26
  %v59 = vmul.f32 %v27, %v27
  %v60 = vmul.f32 %v28, %v28
  %v61 = vmul.f32 %v29, %v29
  %v62 = vmul.f32 %v30, %v30
  %v63 = vmul.f32 %v31, %v31
  %v64 = vmul.f32 %v32, %v32
  %v65 = vmul.f32 %v33, %v33
  %v66 = vmul.f32 %v34, %v34
  %v67 = vmul.f32 %v35, %v35
  %v68 = vmul.f32 %v36, %v36
  %v69 = vmul.f32 %v37, %v37
  %v70 = vmul.f32 %v38, %v38
  %v71 = vmul.f32 %v39, %v39
  %v72 = vmul.f32 %v40, %v40
  %v73 = vmul.f32 %v41, %v41
  %v74 = vmul.f32 %v42, %v42
  %v75 = vmul.f32 %v43, %v43
  %v76 = vmul.f32 %v44, %v44
  %v77 = vmul.f32 %v45, %v45
  %v78 = vmul.f32 %v46, %v46
  %v79 = vmul.f32 %v47, %v47
  %v80 = vmul.f32 %v48, %v48
  %v81 = vmul.f32 %v49, %v49
  %v82 = vmul.f32 %v50, %v50
  %v83 = vadd.f32 %v51, %v67
  %v84 = vadd.f32 %v52, %v68
  %v85 = vadd.f32 %v53, %v69
  %v86 = vadd.f32 %v54, %v70
  %v87 = vadd.f32 %v55, %v71
  %v88 = vadd.f32 %v56, %v72
  %v89 = vadd.f32 %v57, %v73
  %v90 = vadd.f32 %v58, %v74
  %v91 = vadd.f32 %v59, %v75
  %v92 = vadd.f32 %v60, %v76
  %v93 = vadd.f32 %v61, %v77
  %v94 = vadd.f32 %v62, %v78
  %v95 = vadd.f32 %v63, %v79
  %v96 = vadd.f32 %v64, %v80
  %v97 = vadd.f32 %v65, %v81
  %v98 = vadd.f32 %v66, %v82
  %v99 = vld [vmem:[%s1] sm:$0xff]
  %v100 = vld [vmem:[%s1 + $0x8] sm:$0xff]
  %v101 = vld [vmem:[%s1 + $0x10] sm:$0xff]
  %v102 = vld [vmem:[%s1 + $0x18] sm:$0xff]
  %v103 = vld [vmem:[%s1 + $0x20] sm:$0xff]
  %v104 = vld [vmem:[%s1 + $0x28] sm:$0xff]
  %v105 = vld [vmem:[%s1 + $0x30] sm:$0xff]
  %v106 = vld [vmem:[%s1 + $0x38] sm:$0xff]
  %v107 = vld [vmem:[%s1 + $0x40] sm:$0xff]
  %v108 = vld [vmem:[%s1 + $0x48] sm:$0xff]
  %v109 = vld [vmem:[%s1 + $0x50] sm:$0xff]
  %v110 = vld [vmem:[%s1 + $0x58] sm:$0xff]
  %v111 = vld [vmem:[%s1 + $0x60] sm:$0xff]
  %v112 = vld [vmem:[%s1 + $0x68] sm:$0xff]
  %v113 = vld [vmem:[%s1 + $0x70] sm:$0xff]
  %v114 = vld [vmem:[%s1 + $0x78] sm:$0xff]
  %v115 = vld [vmem:[%s1 + $0x80] sm:$0xff]
  %v116 = vld [vmem:[%s1 + $0x88] sm:$0xff]
  %v117 = vld [vmem:[%s1 + $0x90] sm:$0xff]
  %v118 = vld [vmem:[%s1 + $0x98] sm:$0xff]
  %v119 = vld [vmem:[%s1 + $0xa0] sm:$0xff]
  %v120 = vld [vmem:[%s1 + $0xa8] sm:$0xff]
  %v121 = vld [vmem:[%s1 + $0xb0] sm:$0xff]
  %v122 = vld [vmem:[%s1 + $0xb8] sm:$0xff]
  %v123 = vld [vmem:[%s1 + $0xc0] sm:$0xff]
  %v124 = vld [vmem:[%s1 + $0xc8] sm:$0xff]
  %v125 = vld [vmem:[%s1 + $0xd0] sm:$0xff]
  %v126 = vld [vmem:[%s1 + $0xd8] sm:$0xff]
  %v127 = vld [vmem:[%s1 + $0xe0] sm:$0xff]
  %v128 = vld [vmem:[%s1 + $0xe8] sm:$0xff]
  %v129 = vld [vmem:[%s1 + $0xf0] sm:$0xff]
  %v130 = vld [vmem:[%s1 + $0xf8] sm:$0xff]
  %131 = vmatprep.subr.mxu0 0.0
  %132 = vmatpush1.msra.mxu0 %v99
  %133 = vmatprep.subr.mxu0 0.0
  %134 = vmatpush1.msra.mxu0 %v100
  %135 = vmatprep.subr.mxu0 0.0
  %136 = vmatpush1.msra.mxu0 %v101
  %137 = vmatprep.subr.mxu0 0.0
  %138 = vmatpush1.msra.mxu0 %v102
  %139 = vmatprep.subr.mxu0 0.0
  %140 = vmatpush1.msra.mxu0 %v103
  %141 = vmatprep.subr.mxu0 0.0
  %142 = vmatpush1.msra.mxu0 %v104
  %143 = vmatprep.subr.mxu0 0.0
  %144 = vmatpush1.msra.mxu0 %v105
  %145 = vmatprep.subr.mxu0 0.0
  %146 = vmatpush1.msra.mxu0 %v106
  %147 = vmatprep.subr.mxu0 0.0
  %148 = vmatpush1.msra.mxu0 %v107
  %149 = vmatprep.subr.mxu0 0.0
  %150 = vmatpush1.msra.mxu0 %v108
  %151 = vmatprep.subr.mxu0 0.0
  %152 = vmatpush1.msra.mxu0 %v109
  %153 = vmatprep.subr.mxu0 0.0
  %154 = vmatpush1.msra.mxu0 %v110
  %155 = vmatprep.subr.mxu0 0.0
  %156 = vmatpush1.msra.mxu0 %v111
  %157 = vmatprep.subr.mxu0 0.0
  %158 = vmatpush1.msra.mxu0 %v112
  %159 = vmatprep.subr.mxu0 0.0
  %160 = vmatpush1.msra.mxu0 %v113
  %161 = vmatprep.subr.mxu0 0.0
  %162 = vmatpush1.msra.mxu0 %v114
  %163 = vmatprep.subr.mxu0 0.0
  %164 = vmatpush1.msra.mxu0 %v115
  %165 = vmatprep.subr.mxu0 0.0
  %166 = vmatpush1.msra.mxu0 %v116
  %167 = vmatprep.subr.mxu0 0.0
  %168 = vmatpush1.msra.mxu0 %v117
  %169 = vmatprep.subr.mxu0 0.0
  %170 = vmatpush1.msra.mxu0 %v118
  %171 = vmatprep.subr.mxu0 0.0
  %172 = vmatpush1.msra.mxu0 %v119
  %173 = vmatprep.subr.mxu0 0.0
  %174 = vmatpush1.msra.mxu0 %v120
  %175 = vmatprep.subr.mxu0 0.0
  %176 = vmatpush1.msra.mxu0 %v121
  %177 = vmatprep.subr.mxu0 0.0
  %178 = vmatpush1.msra.mxu0 %v122
  %179 = vmatprep.subr.mxu0 0.0
  %180 = vmatpush1.msra.mxu0 %v123
  %181 = vmatprep.subr.mxu0 0.0
  %182 = vmatpush1.msra.mxu0 %v124
  %183 = vmatprep.subr.mxu0 0.0
  %184 = vmatpush1.msra.mxu0 %v125
  %185 = vmatprep.subr.mxu0 0.0
  %186 = vmatpush1.msra.mxu0 %v126
  %187 = vmatprep.subr.mxu0 0.0
  %188 = vmatpush1.msra.mxu0 %v127
  %189 = vmatprep.subr.mxu0 0.0
  %190 = vmatpush1.msra.mxu0 %v128
  %191 = vmatprep.subr.mxu0 0.0
  %192 = vmatpush1.msra.mxu0 %v129
  %193 = vmatprep.subr.mxu0 0.0
  %194 = vmatpush1.msra.mxu0 %v130
  %195 = vmatprep.mubr.f32.mxu0 %v84
  %196 = vmatmul.mubr.f32.gmra.mrb[0].mxu0 %v83
  %v197 = vpop.f32.mrb[0].mxu0
  %v198 = vadd.f32 1e-12, %v197
  %v199 = vpop.f32.mrb[0].mxu0
  %200 = vmatprep.mubr.f32.mxu0 %v86
  %201 = vmatmul.mubr.f32.gmra.mrb[0].mxu0 %v85
  %v202 = vpop.f32.mrb[0].mxu0
  %v203 = vadd.f32 1e-12, %v202
  %v204 = vpop.f32.mrb[0].mxu0
  %205 = vmatprep.mubr.f32.mxu0 %v88
  %206 = vmatmul.mubr.f32.gmra.mrb[0].mxu0 %v87
  %v207 = vpop.f32.mrb[0].mxu0
  %v208 = vadd.f32 1e-12, %v207
  %v209 = vpop.f32.mrb[0].mxu0
  %210 = vmatprep.mubr.f32.mxu0 %v90
  %211 = vmatmul.mubr.f32.gmra.mrb[0].mxu0 %v89
  %v212 = vpop.f32.mrb[0].mxu0
  %v213 = vadd.f32 1e-12, %v212
  %v214 = vpop.f32.mrb[0].mxu0
  %215 = vmatprep.mubr.f32.mxu0 %v92
  %216 = vmatmul.mubr.f32.gmra.mrb[0].mxu0 %v91
  %v217 = vpop.f32.mrb[0].mxu0
  %v218 = vadd.f32 1e-12, %v217
  %v219 = vpop.f32.mrb[0].mxu0
  %220 = vmatprep.mubr.f32.mxu0 %v94
  %221 = vmatmul.mubr.f32.gmra.mrb[0].mxu0 %v93
  %v222 = vpop.f32.mrb[0].mxu0
  %v223 = vadd.f32 1e-12, %v222
  %v224 = vpop.f32.mrb[0].mxu0
  %225 = vmatprep.mubr.f32.mxu0 %v96
  %226 = vmatmul.mubr.f32.gmra.mrb[0].mxu0 %v95
  %v227 = vpop.f32.mrb[0].mxu0
  %v228 = vadd.f32 1e-12, %v227
  %v229 = vpop.f32.mrb[0].mxu0
  %230 = vmatprep.mubr.f32.mxu0 %v98
  %231 = vmatmul.mubr.f32.gmra.mrb[0].mxu0 %v97
  %v232 = vpop.f32.mrb[0].mxu0
  %v233 = vadd.f32 1e-12, %v232
  %v234 = vpop.f32.mrb[0].mxu0
  %235 = vdwg.mxu0
  %v236 = vlog2.pop %v198
  %v237 = vmul.f32 %v236, 0.6931472
  %v238 = vlog2.pop %v203
  %v239 = vmul.f32 %v238, 0.6931472
  %v240 = vlog2.pop %v208
  %v241 = vmul.f32 %v240, 0.6931472
  %v242 = vlog2.pop %v213
  %v243 = vmul.f32 %v242, 0.6931472
  %v244 = vlog2.pop %v218
  %v245 = vmul.f32 %v244, 0.6931472
  %v246 = vlog2.pop %v223
  %v247 = vmul.f32 %v246, 0.6931472
  %v248 = vlog2.pop %v228
  %v249 = vmul.f32 %v248, 0.6931472
  %v250 = vlog2.pop %v233
  %v251 = vmul.f32 %v250, 0.6931472
  %v252 = vmul.f32 %v237, 4.3429446
  %v253 = vmul.f32 %v239, 4.3429446
  %v254 = vmul.f32 %v241, 4.3429446
  %v255 = vmul.f32 %v243, 4.3429446
  %v256 = vmul.f32 %v245, 4.3429446
  %v257 = vmul.f32 %v247, 4.3429446
  %v258 = vmul.f32 %v249, 4.3429446
  %v259 = vmul.f32 %v251, 4.3429446
  %264 = vrot.lane.b32.xlu0 %v252, 104
  %v265 = vpop.permute.xlu0 %264
  %266 = vrot.lane.b32.xlu0 %v253, 104
  %v267 = vpop.permute.xlu0 %266
  %268 = vrot.lane.b32.xlu0 %v254, 104
  %v269 = vpop.permute.xlu0 %268
  %270 = vrot.lane.b32.xlu0 %v255, 104
  %v271 = vpop.permute.xlu0 %270
  %vm276 = vcmp.gt.f32.partialorder %v256, %v265
  %vm277 = vcmp.gt.f32.partialorder %v257, %v267
  %vm278 = vcmp.gt.f32.partialorder %v258, %v269
  %vm279 = vcmp.gt.f32.partialorder %v259, %v271
  %v280 = vsel %vm276, 1.0, 0.0
  %v281 = vsel %vm277, 1.0, 0.0
  %v282 = vsel %vm278, 1.0, 0.0
  %v283 = vsel %vm279, 1.0, 0.0
  %v284 = vld [vmem:[%s3] sm:$0xff]
  %v285 = vld [vmem:[%s3 + $0x8] sm:$0xff]
  %v286 = vld [vmem:[%s3 + $0x10] sm:$0xff]
  %v287 = vld [vmem:[%s3 + $0x18] sm:$0xff]
  %v288 = vld [vmem:[%s3 + $0x20] sm:$0xff]
  %v289 = vld [vmem:[%s3 + $0x28] sm:$0xff]
  %v290 = vld [vmem:[%s3 + $0x30] sm:$0xff]
  %v291 = vld [vmem:[%s3 + $0x38] sm:$0xff]
  %v292 = vld [vmem:[%s3 + $0x40] sm:$0xff]
  %v293 = vld [vmem:[%s3 + $0x48] sm:$0xff]
  %v294 = vld [vmem:[%s3 + $0x50] sm:$0xff]
  %v295 = vld [vmem:[%s3 + $0x58] sm:$0xff]
  %v296 = vld [vmem:[%s3 + $0x60] sm:$0xff]
  %v297 = vld [vmem:[%s3 + $0x68] sm:$0xff]
  %v298 = vld [vmem:[%s3 + $0x70] sm:$0xff]
  %vm299 = vcmask 195584
  %v301 = vsel %vm299, %v256, 0
  %v304 = vsel %vm299, %v257, 0
  %v307 = vsel %vm299, %v258, 0
  %v310 = vsel %vm299, %v259, 0
  %312 = vmatprep.subr.mxu0 0.0
  %313 = vmatpush1.msra.mxu0 %v287
  %314 = vmatprep.subr.mxu0 0.0
  %315 = vmatpush1.msra.mxu0 %v288
  %316 = vmatprep.subr.mxu0 0.0
  %317 = vmatpush1.msra.mxu0 %v289
  %318 = vmatprep.subr.mxu0 0.0
  %319 = vmatpush1.msra.mxu0 0.0
  %320 = vmatprep.subr.mxu0 0.0
  %321 = vmatpush1.msra.mxu0 0.0
  %322 = vmatprep.subr.mxu0 0.0
  %323 = vmatpush1.msra.mxu0 0.0
  %324 = vmatprep.subr.mxu0 0.0
  %325 = vmatpush1.msra.mxu0 0.0
  %326 = vmatprep.subr.mxu0 0.0
  %327 = vmatpush1.msra.mxu0 0.0
  %328 = vmatprep.subr.mxu0 0.0
  %329 = vmatpush1.msra.mxu0 0.0
  %330 = vmatprep.subr.mxu0 0.0
  %331 = vmatpush1.msra.mxu0 0.0
  %332 = vmatprep.subr.mxu0 0.0
  %333 = vmatpush1.msra.mxu0 0.0
  %334 = vmatprep.subr.mxu0 0.0
  %335 = vmatpush1.msra.mxu0 0.0
  %336 = vmatprep.subr.mxu0 0.0
  %337 = vmatpush1.msra.mxu0 0.0
  %338 = vmatprep.subr.mxu0 0.0
  %339 = vmatpush1.msra.mxu0 0.0
  %340 = vmatprep.subr.mxu0 0.0
  %341 = vmatpush1.msra.mxu0 0.0
  %342 = vmatprep.subr.mxu0 0.0
  %343 = vmatpush1.msra.mxu0 0.0
  %344 = vmatprep.subr.mxu0 0.0
  %345 = vmatpush1.msra.mxu0 0.0
  %346 = vmatprep.subr.mxu0 0.0
  %347 = vmatpush1.msra.mxu0 0.0
  %348 = vmatprep.subr.mxu0 0.0
  %349 = vmatpush1.msra.mxu0 0.0
  %350 = vmatprep.subr.mxu0 0.0
  %351 = vmatpush1.msra.mxu0 0.0
  %352 = vmatprep.subr.mxu0 0.0
  %353 = vmatpush1.msra.mxu0 0.0
  %354 = vmatprep.subr.mxu0 0.0
  %355 = vmatpush1.msra.mxu0 0.0
  %356 = vmatprep.subr.mxu0 0.0
  %357 = vmatpush1.msra.mxu0 0.0
  %358 = vmatprep.subr.mxu0 0.0
  %359 = vmatpush1.msra.mxu0 0.0
  %360 = vmatprep.subr.mxu0 0.0
  %361 = vmatpush1.msra.mxu0 0.0
  %362 = vmatprep.subr.mxu0 0.0
  %363 = vmatpush1.msra.mxu0 0.0
  %364 = vmatprep.subr.mxu0 0.0
  %365 = vmatpush1.msra.mxu0 0.0
  %366 = vmatprep.subr.mxu0 0.0
  %367 = vmatpush1.msra.mxu0 0.0
  %368 = vmatprep.subr.mxu0 0.0
  %369 = vmatpush1.msra.mxu0 0.0
  %370 = vmatprep.subr.mxu0 0.0
  %371 = vmatpush1.msra.mxu0 0.0
  %372 = vmatprep.subr.mxu0 0.0
  %373 = vmatpush1.msra.mxu0 0.0
  %374 = vmatprep.subr.mxu0 0.0
  %375 = vmatpush1.msra.mxu0 0.0
  %376 = vmatprep.mubr.f32.mxu0 0.0
  %377 = vmatmul.mubr.f32.gmra.mrb[0].mxu0 %v301
  %v378 = vpop.f32.mrb[0].mxu0
  %v379 = vadd.f32 0.0, %v378
  %v380 = vpop.f32.mrb[0].mxu0
  %381 = vmatprep.mubr.f32.mxu0 0.0
  %382 = vmatmul.mubr.f32.gmra.mrb[0].mxu0 %v304
  %v383 = vpop.f32.mrb[0].mxu0
  %v384 = vadd.f32 0.0, %v383
  %v385 = vpop.f32.mrb[0].mxu0
  %386 = vmatprep.mubr.f32.mxu0 0.0
  %387 = vmatmul.mubr.f32.gmra.mrb[0].mxu0 %v307
  %v388 = vpop.f32.mrb[0].mxu0
  %v389 = vadd.f32 0.0, %v388
  %v390 = vpop.f32.mrb[0].mxu0
  %391 = vmatprep.mubr.f32.mxu0 0.0
  %392 = vmatmul.mubr.f32.gmra.mrb[0].mxu0 %v310
  %v393 = vpop.f32.mrb[0].mxu0
  %v394 = vadd.f32 0.0, %v393
  %v395 = vpop.f32.mrb[0].mxu0
  %396 = vdwg.mxu0
  %v397 = vsel %vm299, %v252, 0
  %v399 = vsel %vm299, %v253, 0
  %v401 = vsel %vm299, %v254, 0
  %v403 = vsel %vm299, %v255, 0
  %405 = vmatprep.subr.mxu0 0.0
  %406 = vmatpush1.msra.mxu0 %v284
  %407 = vmatprep.subr.mxu0 0.0
  %408 = vmatpush1.msra.mxu0 %v285
  %409 = vmatprep.subr.mxu0 0.0
  %410 = vmatpush1.msra.mxu0 %v286
  %411 = vmatprep.subr.mxu0 0.0
  %412 = vmatpush1.msra.mxu0 0.0
  %413 = vmatprep.subr.mxu0 0.0
  %414 = vmatpush1.msra.mxu0 0.0
  %415 = vmatprep.subr.mxu0 0.0
  %416 = vmatpush1.msra.mxu0 0.0
  %417 = vmatprep.subr.mxu0 0.0
  %418 = vmatpush1.msra.mxu0 0.0
  %419 = vmatprep.subr.mxu0 0.0
  %420 = vmatpush1.msra.mxu0 0.0
  %421 = vmatprep.subr.mxu0 0.0
  %422 = vmatpush1.msra.mxu0 0.0
  %423 = vmatprep.subr.mxu0 0.0
  %424 = vmatpush1.msra.mxu0 0.0
  %425 = vmatprep.subr.mxu0 0.0
  %426 = vmatpush1.msra.mxu0 0.0
  %427 = vmatprep.subr.mxu0 0.0
  %428 = vmatpush1.msra.mxu0 0.0
  %429 = vmatprep.subr.mxu0 0.0
  %430 = vmatpush1.msra.mxu0 0.0
  %431 = vmatprep.subr.mxu0 0.0
  %432 = vmatpush1.msra.mxu0 0.0
  %433 = vmatprep.subr.mxu0 0.0
  %434 = vmatpush1.msra.mxu0 0.0
  %435 = vmatprep.subr.mxu0 0.0
  %436 = vmatpush1.msra.mxu0 0.0
  %437 = vmatprep.subr.mxu0 0.0
  %438 = vmatpush1.msra.mxu0 0.0
  %439 = vmatprep.subr.mxu0 0.0
  %440 = vmatpush1.msra.mxu0 0.0
  %441 = vmatprep.subr.mxu0 0.0
  %442 = vmatpush1.msra.mxu0 0.0
  %443 = vmatprep.subr.mxu0 0.0
  %444 = vmatpush1.msra.mxu0 0.0
  %445 = vmatprep.subr.mxu0 0.0
  %446 = vmatpush1.msra.mxu0 0.0
  %447 = vmatprep.subr.mxu0 0.0
  %448 = vmatpush1.msra.mxu0 0.0
  %449 = vmatprep.subr.mxu0 0.0
  %450 = vmatpush1.msra.mxu0 0.0
  %451 = vmatprep.subr.mxu0 0.0
  %452 = vmatpush1.msra.mxu0 0.0
  %453 = vmatprep.subr.mxu0 0.0
  %454 = vmatpush1.msra.mxu0 0.0
  %455 = vmatprep.subr.mxu0 0.0
  %456 = vmatpush1.msra.mxu0 0.0
  %457 = vmatprep.subr.mxu0 0.0
  %458 = vmatpush1.msra.mxu0 0.0
  %459 = vmatprep.subr.mxu0 0.0
  %460 = vmatpush1.msra.mxu0 0.0
  %461 = vmatprep.subr.mxu0 0.0
  %462 = vmatpush1.msra.mxu0 0.0
  %463 = vmatprep.subr.mxu0 0.0
  %464 = vmatpush1.msra.mxu0 0.0
  %465 = vmatprep.subr.mxu0 0.0
  %466 = vmatpush1.msra.mxu0 0.0
  %467 = vmatprep.subr.mxu0 0.0
  %468 = vmatpush1.msra.mxu0 0.0
  %469 = vmatprep.mubr.f32.mxu0 0.0
  %470 = vmatmul.mubr.f32.gmra.mrb[0].mxu0 %v397
  %v471 = vpop.f32.mrb[0].mxu0
  %v472 = vadd.f32 %v379, %v471
  %v473 = vpop.f32.mrb[0].mxu0
  %474 = vmatprep.mubr.f32.mxu0 0.0
  %475 = vmatmul.mubr.f32.gmra.mrb[0].mxu0 %v399
  %v476 = vpop.f32.mrb[0].mxu0
  %v477 = vadd.f32 %v384, %v476
  %v478 = vpop.f32.mrb[0].mxu0
  %479 = vmatprep.mubr.f32.mxu0 0.0
  %480 = vmatmul.mubr.f32.gmra.mrb[0].mxu0 %v401
  %v481 = vpop.f32.mrb[0].mxu0
  %v482 = vadd.f32 %v389, %v481
  %v483 = vpop.f32.mrb[0].mxu0
  %484 = vmatprep.mubr.f32.mxu0 0.0
  %485 = vmatmul.mubr.f32.gmra.mrb[0].mxu0 %v403
  %v486 = vpop.f32.mrb[0].mxu0
  %v487 = vadd.f32 %v394, %v486
  %v488 = vpop.f32.mrb[0].mxu0
  %489 = vdwg.mxu0
  %v490 = vsel %vm299, %v265, 0
  %v492 = vsel %vm299, %v267, 0
  %v494 = vsel %vm299, %v269, 0
  %v496 = vsel %vm299, %v271, 0
  %498 = vmatprep.subr.mxu0 0.0
  %499 = vmatpush1.msra.mxu0 %v290
  %500 = vmatprep.subr.mxu0 0.0
  %501 = vmatpush1.msra.mxu0 %v291
  %502 = vmatprep.subr.mxu0 0.0
  %503 = vmatpush1.msra.mxu0 %v292
  %504 = vmatprep.subr.mxu0 0.0
  %505 = vmatpush1.msra.mxu0 0.0
  %506 = vmatprep.subr.mxu0 0.0
  %507 = vmatpush1.msra.mxu0 0.0
  %508 = vmatprep.subr.mxu0 0.0
  %509 = vmatpush1.msra.mxu0 0.0
  %510 = vmatprep.subr.mxu0 0.0
  %511 = vmatpush1.msra.mxu0 0.0
  %512 = vmatprep.subr.mxu0 0.0
  %513 = vmatpush1.msra.mxu0 0.0
  %514 = vmatprep.subr.mxu0 0.0
  %515 = vmatpush1.msra.mxu0 0.0
  %516 = vmatprep.subr.mxu0 0.0
  %517 = vmatpush1.msra.mxu0 0.0
  %518 = vmatprep.subr.mxu0 0.0
  %519 = vmatpush1.msra.mxu0 0.0
  %520 = vmatprep.subr.mxu0 0.0
  %521 = vmatpush1.msra.mxu0 0.0
  %522 = vmatprep.subr.mxu0 0.0
  %523 = vmatpush1.msra.mxu0 0.0
  %524 = vmatprep.subr.mxu0 0.0
  %525 = vmatpush1.msra.mxu0 0.0
  %526 = vmatprep.subr.mxu0 0.0
  %527 = vmatpush1.msra.mxu0 0.0
  %528 = vmatprep.subr.mxu0 0.0
  %529 = vmatpush1.msra.mxu0 0.0
  %530 = vmatprep.subr.mxu0 0.0
  %531 = vmatpush1.msra.mxu0 0.0
  %532 = vmatprep.subr.mxu0 0.0
  %533 = vmatpush1.msra.mxu0 0.0
  %534 = vmatprep.subr.mxu0 0.0
  %535 = vmatpush1.msra.mxu0 0.0
  %536 = vmatprep.subr.mxu0 0.0
  %537 = vmatpush1.msra.mxu0 0.0
  %538 = vmatprep.subr.mxu0 0.0
  %539 = vmatpush1.msra.mxu0 0.0
  %540 = vmatprep.subr.mxu0 0.0
  %541 = vmatpush1.msra.mxu0 0.0
  %542 = vmatprep.subr.mxu0 0.0
  %543 = vmatpush1.msra.mxu0 0.0
  %544 = vmatprep.subr.mxu0 0.0
  %545 = vmatpush1.msra.mxu0 0.0
  %546 = vmatprep.subr.mxu0 0.0
  %547 = vmatpush1.msra.mxu0 0.0
  %548 = vmatprep.subr.mxu0 0.0
  %549 = vmatpush1.msra.mxu0 0.0
  %550 = vmatprep.subr.mxu0 0.0
  %551 = vmatpush1.msra.mxu0 0.0
  %552 = vmatprep.subr.mxu0 0.0
  %553 = vmatpush1.msra.mxu0 0.0
  %554 = vmatprep.subr.mxu0 0.0
  %555 = vmatpush1.msra.mxu0 0.0
  %556 = vmatprep.subr.mxu0 0.0
  %557 = vmatpush1.msra.mxu0 0.0
  %558 = vmatprep.subr.mxu0 0.0
  %559 = vmatpush1.msra.mxu0 0.0
  %560 = vmatprep.subr.mxu0 0.0
  %561 = vmatpush1.msra.mxu0 0.0
  %562 = vmatprep.mubr.f32.mxu0 0.0
  %563 = vmatmul.mubr.f32.gmra.mrb[0].mxu0 %v490
  %v564 = vpop.f32.mrb[0].mxu0
  %v565 = vadd.f32 0.0, %v564
  %v566 = vpop.f32.mrb[0].mxu0
  %567 = vmatprep.mubr.f32.mxu0 0.0
  %568 = vmatmul.mubr.f32.gmra.mrb[0].mxu0 %v492
  %v569 = vpop.f32.mrb[0].mxu0
  %v570 = vadd.f32 0.0, %v569
  %v571 = vpop.f32.mrb[0].mxu0
  %572 = vmatprep.mubr.f32.mxu0 0.0
  %573 = vmatmul.mubr.f32.gmra.mrb[0].mxu0 %v494
  %v574 = vpop.f32.mrb[0].mxu0
  %v575 = vadd.f32 0.0, %v574
  %v576 = vpop.f32.mrb[0].mxu0
  %577 = vmatprep.mubr.f32.mxu0 0.0
  %578 = vmatmul.mubr.f32.gmra.mrb[0].mxu0 %v496
  %v579 = vpop.f32.mrb[0].mxu0
  %v580 = vadd.f32 0.0, %v579
  %v581 = vpop.f32.mrb[0].mxu0
  %582 = vdwg.mxu0
  %v583 = vadd.f32 %v472, %v565
  %v584 = vadd.f32 %v477, %v570
  %v585 = vadd.f32 %v482, %v575
  %v586 = vadd.f32 %v487, %v580
  %v587 = vlaneseq
  %v588 = vshrl.u32 %v587, 7
  %v589 = vsub.s32 0, %v588
  %v590 = vrot.slane %v293, %v589
  %v591 = vadd.f32 %v583, %v590
  %v592 = vadd.f32 %v584, %v590
  %v593 = vadd.f32 %v585, %v590
  %v594 = vadd.f32 %v586, %v590
  %v595 = vtanh.pop %v591
  %v596 = vtanh.pop %v592
  %v597 = vtanh.pop %v593
  %v598 = vtanh.pop %v594
  %v599 = vlaneseq
  %v600 = vshrl.u32 %v599, 7
  %v601 = vsub.s32 0, %v600
  %v602 = vrot.slane %v298, %v601
  %vm603 = vcmask 261120
  %v605 = vsel %vm603, %v595, 0
  %v608 = vsel %vm603, %v596, 0
  %v611 = vsel %vm603, %v597, 0
  %v614 = vsel %vm603, %v598, 0
  %616 = vmatprep.subr.mxu0 0.0
  %617 = vmatpush1.msra.mxu0 %v294
  %618 = vmatprep.subr.mxu0 0.0
  %619 = vmatpush1.msra.mxu0 %v295
  %620 = vmatprep.subr.mxu0 0.0
  %621 = vmatpush1.msra.mxu0 %v296
  %622 = vmatprep.subr.mxu0 0.0
  %623 = vmatpush1.msra.mxu0 %v297
  %624 = vmatprep.subr.mxu0 0.0
  %625 = vmatpush1.msra.mxu0 0.0
  %626 = vmatprep.subr.mxu0 0.0
  %627 = vmatpush1.msra.mxu0 0.0
  %628 = vmatprep.subr.mxu0 0.0
  %629 = vmatpush1.msra.mxu0 0.0
  %630 = vmatprep.subr.mxu0 0.0
  %631 = vmatpush1.msra.mxu0 0.0
  %632 = vmatprep.subr.mxu0 0.0
  %633 = vmatpush1.msra.mxu0 0.0
  %634 = vmatprep.subr.mxu0 0.0
  %635 = vmatpush1.msra.mxu0 0.0
  %636 = vmatprep.subr.mxu0 0.0
  %637 = vmatpush1.msra.mxu0 0.0
  %638 = vmatprep.subr.mxu0 0.0
  %639 = vmatpush1.msra.mxu0 0.0
  %640 = vmatprep.subr.mxu0 0.0
  %641 = vmatpush1.msra.mxu0 0.0
  %642 = vmatprep.subr.mxu0 0.0
  %643 = vmatpush1.msra.mxu0 0.0
  %644 = vmatprep.subr.mxu0 0.0
  %645 = vmatpush1.msra.mxu0 0.0
  %646 = vmatprep.subr.mxu0 0.0
  %647 = vmatpush1.msra.mxu0 0.0
  %648 = vmatprep.subr.mxu0 0.0
  %649 = vmatpush1.msra.mxu0 0.0
  %650 = vmatprep.subr.mxu0 0.0
  %651 = vmatpush1.msra.mxu0 0.0
  %652 = vmatprep.subr.mxu0 0.0
  %653 = vmatpush1.msra.mxu0 0.0
  %654 = vmatprep.subr.mxu0 0.0
  %655 = vmatpush1.msra.mxu0 0.0
  %656 = vmatprep.subr.mxu0 0.0
  %657 = vmatpush1.msra.mxu0 0.0
  %658 = vmatprep.subr.mxu0 0.0
  %659 = vmatpush1.msra.mxu0 0.0
  %660 = vmatprep.subr.mxu0 0.0
  %661 = vmatpush1.msra.mxu0 0.0
  %662 = vmatprep.subr.mxu0 0.0
  %663 = vmatpush1.msra.mxu0 0.0
  %664 = vmatprep.subr.mxu0 0.0
  %665 = vmatpush1.msra.mxu0 0.0
  %666 = vmatprep.subr.mxu0 0.0
  %667 = vmatpush1.msra.mxu0 0.0
  %668 = vmatprep.subr.mxu0 0.0
  %669 = vmatpush1.msra.mxu0 0.0
  %670 = vmatprep.subr.mxu0 0.0
  %671 = vmatpush1.msra.mxu0 0.0
  %672 = vmatprep.subr.mxu0 0.0
  %673 = vmatpush1.msra.mxu0 0.0
  %674 = vmatprep.subr.mxu0 0.0
  %675 = vmatpush1.msra.mxu0 0.0
  %676 = vmatprep.subr.mxu0 0.0
  %677 = vmatpush1.msra.mxu0 0.0
  %678 = vmatprep.subr.mxu0 0.0
  %679 = vmatpush1.msra.mxu0 0.0
  %680 = vmatprep.mubr.f32.mxu0 0.0
  %681 = vmatmul.mubr.f32.gmra.mrb[0].mxu0 %v605
  %v682 = vpop.f32.mrb[0].mxu0
  %v683 = vadd.f32 %v602, %v682
  %v684 = vpop.f32.mrb[0].mxu0
  %685 = vmatprep.mubr.f32.mxu0 0.0
  %686 = vmatmul.mubr.f32.gmra.mrb[0].mxu0 %v608
  %v687 = vpop.f32.mrb[0].mxu0
  %v688 = vadd.f32 %v602, %v687
  %v689 = vpop.f32.mrb[0].mxu0
  %690 = vmatprep.mubr.f32.mxu0 0.0
  %691 = vmatmul.mubr.f32.gmra.mrb[0].mxu0 %v611
  %v692 = vpop.f32.mrb[0].mxu0
  %v693 = vadd.f32 %v602, %v692
  %v694 = vpop.f32.mrb[0].mxu0
  %695 = vmatprep.mubr.f32.mxu0 0.0
  %696 = vmatmul.mubr.f32.gmra.mrb[0].mxu0 %v614
  %v697 = vpop.f32.mrb[0].mxu0
  %v698 = vadd.f32 %v602, %v697
  %v699 = vpop.f32.mrb[0].mxu0
  %700 = vdwg.mxu0
  %v701 = vmax.f32 %v683, -30.0
  %v702 = vmax.f32 %v688, -30.0
  %v703 = vmax.f32 %v693, -30.0
  %v704 = vmax.f32 %v698, -30.0
  %v705 = vmin.f32 %v701, 12.0
  %v706 = vmin.f32 %v702, 12.0
  %v707 = vmin.f32 %v703, 12.0
  %v708 = vmin.f32 %v704, 12.0
  %v709 = vmul.f32 %v705, 0.98412734
  %v710 = vmul.f32 %v705, 0.015872657
  %v711 = vadd.f32 %v709, %v710
  %v712 = vmul.f32 %v711, 0.98412734
  %v714 = vrot.slane %v710, 1
  %v716 = vadd.f32 %v712, %v714
  %v717 = vmul.f32 %v716, 0.98412734
  %v718 = vrot.slane %v710, 2
  %v720 = vadd.f32 %v717, %v718
  %v721 = vmul.f32 %v720, 0.98412734
  %v722 = vrot.slane %v710, 3
  %v724 = vadd.f32 %v721, %v722
  %v725 = vmul.f32 %v724, 0.98412734
  %v726 = vrot.slane %v710, 4
  %v728 = vadd.f32 %v725, %v726
  %v729 = vmul.f32 %v728, 0.98412734
  %v730 = vrot.slane %v710, 5
  %v732 = vadd.f32 %v729, %v730
  %v733 = vmul.f32 %v732, 0.98412734
  %v734 = vrot.slane %v710, 6
  %v736 = vadd.f32 %v733, %v734
  %v737 = vmul.f32 %v736, 0.98412734
  %v738 = vrot.slane %v710, 7
  %v740 = vadd.f32 %v737, %v738
  %v741 = vmul.f32 %v740, 0.98412734
  %v742 = vmul.f32 %v706, 0.015872657
  %v743 = vadd.f32 %v741, %v742
  %v744 = vmul.f32 %v743, 0.98412734
  %v746 = vrot.slane %v742, 1
  %v748 = vadd.f32 %v744, %v746
  %v749 = vmul.f32 %v748, 0.98412734
  %v750 = vrot.slane %v742, 2
  %v752 = vadd.f32 %v749, %v750
  %v753 = vmul.f32 %v752, 0.98412734
  %v754 = vrot.slane %v742, 3
  %v756 = vadd.f32 %v753, %v754
  %v757 = vmul.f32 %v756, 0.98412734
  %v758 = vrot.slane %v742, 4
  %v760 = vadd.f32 %v757, %v758
  %v761 = vmul.f32 %v760, 0.98412734
  %v762 = vrot.slane %v742, 5
  %v764 = vadd.f32 %v761, %v762
  %v765 = vmul.f32 %v764, 0.98412734
  %v766 = vrot.slane %v742, 6
  %v768 = vadd.f32 %v765, %v766
  %v769 = vmul.f32 %v768, 0.98412734
  %v770 = vrot.slane %v742, 7
  %v772 = vadd.f32 %v769, %v770
  %v773 = vmul.f32 %v772, 0.98412734
  %v774 = vmul.f32 %v707, 0.015872657
  %v775 = vadd.f32 %v773, %v774
  %v776 = vmul.f32 %v775, 0.98412734
  %v778 = vrot.slane %v774, 1
  %v780 = vadd.f32 %v776, %v778
  %v781 = vmul.f32 %v780, 0.98412734
  %v782 = vrot.slane %v774, 2
  %v784 = vadd.f32 %v781, %v782
  %v785 = vmul.f32 %v784, 0.98412734
  %v786 = vrot.slane %v774, 3
  %v788 = vadd.f32 %v785, %v786
  %v789 = vmul.f32 %v788, 0.98412734
  %v790 = vrot.slane %v774, 4
  %v792 = vadd.f32 %v789, %v790
  %v793 = vmul.f32 %v792, 0.98412734
  %v794 = vrot.slane %v774, 5
  %v796 = vadd.f32 %v793, %v794
  %v797 = vmul.f32 %v796, 0.98412734
  %v798 = vrot.slane %v774, 6
  %v800 = vadd.f32 %v797, %v798
  %v801 = vmul.f32 %v800, 0.98412734
  %v802 = vrot.slane %v774, 7
  %v804 = vadd.f32 %v801, %v802
  %v805 = vmul.f32 %v804, 0.98412734
  %v806 = vmul.f32 %v708, 0.015872657
  %v807 = vadd.f32 %v805, %v806
  %v808 = vmul.f32 %v807, 0.98412734
  %v810 = vrot.slane %v806, 1
  %v812 = vadd.f32 %v808, %v810
  %v813 = vmul.f32 %v812, 0.98412734
  %v814 = vrot.slane %v806, 2
  %v816 = vadd.f32 %v813, %v814
  %v817 = vmul.f32 %v816, 0.98412734
  %v818 = vrot.slane %v806, 3
  %v820 = vadd.f32 %v817, %v818
  %v821 = vmul.f32 %v820, 0.98412734
  %v822 = vrot.slane %v806, 4
  %v824 = vadd.f32 %v821, %v822
  %v826 = vrot.slane %v716, 7
  %v829 = vrot.slane %v720, 6
  %v832 = vrot.slane %v724, 5
  %v835 = vrot.slane %v728, 4
  %v838 = vrot.slane %v732, 3
  %v841 = vrot.slane %v736, 2
  %v844 = vrot.slane %v740, 1
  %v847 = vrot.slane %v748, 7
  %v850 = vrot.slane %v752, 6
  %v853 = vrot.slane %v756, 5
  %v856 = vrot.slane %v760, 4
  %v859 = vrot.slane %v764, 3
  %v862 = vrot.slane %v768, 2
  %v865 = vrot.slane %v772, 1
  %vm867 = vcmask 1040384
  %v868 = vsel %vm867, %v711, %v826
  %vm869 = vcmask 1041408
  %v870 = vsel %vm869, %v868, %v829
  %vm871 = vcmask 1042432
  %v872 = vsel %vm871, %v870, %v832
  %vm873 = vcmask 1043456
  %v874 = vsel %vm873, %v872, %v835
  %vm875 = vcmask 1044480
  %v876 = vsel %vm875, %v874, %v838
  %vm877 = vcmask 1045504
  %v878 = vsel %vm877, %v876, %v841
  %vm879 = vcmask 1046528
  %v880 = vsel %vm879, %v878, %v844
  %v881 = vsel %vm867, %v743, %v847
  %v882 = vsel %vm869, %v881, %v850
  %v883 = vsel %vm871, %v882, %v853
  %v884 = vsel %vm873, %v883, %v856
  %v885 = vsel %vm875, %v884, %v859
  %v886 = vsel %vm877, %v885, %v862
  %v887 = vsel %vm879, %v886, %v865
  %v889 = vrot.slane %v780, 7
  %v892 = vrot.slane %v784, 6
  %v895 = vrot.slane %v788, 5
  %v898 = vrot.slane %v792, 4
  %v901 = vrot.slane %v796, 3
  %v904 = vrot.slane %v800, 2
  %v907 = vrot.slane %v804, 1
  %v910 = vrot.slane %v812, 7
  %v913 = vrot.slane %v816, 6
  %v916 = vrot.slane %v820, 5
  %v919 = vrot.slane %v824, 4
  %v921 = vsel %vm867, %v775, %v889
  %v922 = vsel %vm869, %v921, %v892
  %v923 = vsel %vm871, %v922, %v895
  %v924 = vsel %vm873, %v923, %v898
  %v925 = vsel %vm875, %v924, %v901
  %v926 = vsel %vm877, %v925, %v904
  %v927 = vsel %vm879, %v926, %v907
  %v928 = vsel %vm867, %v807, %v910
  %v929 = vsel %vm869, %v928, %v913
  %v930 = vsel %vm871, %v929, %v916
  %v931 = vsel %vm873, %v930, %v919
  %v932 = vsel %vm875, %v931, %v708
  %v933 = vsel %vm877, %v932, %v708
  %v934 = vsel %vm879, %v933, %v708
  %939 = vrot.lane.b32.xlu0 %v280, 24
  %v940 = vpop.permute.xlu0 %939
  %941 = vrot.lane.b32.xlu0 %v281, 24
  %v942 = vpop.permute.xlu0 %941
  %943 = vrot.lane.b32.xlu0 %v282, 24
  %v944 = vpop.permute.xlu0 %943
  %945 = vrot.lane.b32.xlu0 %v283, 24
  %v946 = vpop.permute.xlu0 %945
  %v951 = vsel %vm299, %v880, %v940
  %v952 = vsel %vm299, %v887, %v942
  %v953 = vsel %vm299, %v927, %v944
  %v954 = vsel %vm299, %v934, %v946
  %vm955 = vcmask 392192
  %956 = vst.msk [vmem:[%s5] sm:$0xff] %vm955, %v951
  %957 = vst.msk [vmem:[%s5 + $0x8] sm:$0xff] %vm955, %v952
  %958 = vst.msk [vmem:[%s5 + $0x10] sm:$0xff] %vm955, %v953
  %959 = vst.msk [vmem:[%s5 + $0x18] sm:$0xff] %vm955, %v954
  %v960 = vld [vmem:[%s2] sm:$0xff]
  %v961 = vld [vmem:[%s2 + $0x8] sm:$0xff]
  %v962 = vld [vmem:[%s2 + $0x10] sm:$0xff]
  %v963 = vld [vmem:[%s2 + $0x18] sm:$0xff]
  %v964 = vld [vmem:[%s2 + $0x20] sm:$0xff]
  %v965 = vld [vmem:[%s2 + $0x28] sm:$0xff]
  %v967 = vsel %vm299, %v880, 0
  %v970 = vsel %vm299, %v887, 0
  %v973 = vsel %vm299, %v927, 0
  %v976 = vsel %vm299, %v934, 0
  %978 = vmatprep.subr.mxu0 %v961
  %979 = vmatpush1.msra.mxu0 %v960
  %980 = vmatprep.subr.mxu0 %v963
  %981 = vmatpush1.msra.mxu0 %v962
  %982 = vmatprep.subr.mxu0 %v965
  %983 = vmatpush1.msra.mxu0 %v964
  %984 = vmatprep.subr.mxu0 0.0
  %985 = vmatpush1.msra.mxu0 0.0
  %986 = vmatprep.subr.mxu0 0.0
  %987 = vmatpush1.msra.mxu0 0.0
  %988 = vmatprep.subr.mxu0 0.0
  %989 = vmatpush1.msra.mxu0 0.0
  %990 = vmatprep.subr.mxu0 0.0
  %991 = vmatpush1.msra.mxu0 0.0
  %992 = vmatprep.subr.mxu0 0.0
  %993 = vmatpush1.msra.mxu0 0.0
  %994 = vmatprep.subr.mxu0 0.0
  %995 = vmatpush1.msra.mxu0 0.0
  %996 = vmatprep.subr.mxu0 0.0
  %997 = vmatpush1.msra.mxu0 0.0
  %998 = vmatprep.subr.mxu0 0.0
  %999 = vmatpush1.msra.mxu0 0.0
  %1000 = vmatprep.subr.mxu0 0.0
  %1001 = vmatpush1.msra.mxu0 0.0
  %1002 = vmatprep.subr.mxu0 0.0
  %1003 = vmatpush1.msra.mxu0 0.0
  %1004 = vmatprep.subr.mxu0 0.0
  %1005 = vmatpush1.msra.mxu0 0.0
  %1006 = vmatprep.subr.mxu0 0.0
  %1007 = vmatpush1.msra.mxu0 0.0
  %1008 = vmatprep.subr.mxu0 0.0
  %1009 = vmatpush1.msra.mxu0 0.0
  %1010 = vmatprep.subr.mxu0 0.0
  %1011 = vmatpush1.msra.mxu0 0.0
  %1012 = vmatprep.subr.mxu0 0.0
  %1013 = vmatpush1.msra.mxu0 0.0
  %1014 = vmatprep.subr.mxu0 0.0
  %1015 = vmatpush1.msra.mxu0 0.0
  %1016 = vmatprep.subr.mxu0 0.0
  %1017 = vmatpush1.msra.mxu0 0.0
  %1018 = vmatprep.subr.mxu0 0.0
  %1019 = vmatpush1.msra.mxu0 0.0
  %1020 = vmatprep.subr.mxu0 0.0
  %1021 = vmatpush1.msra.mxu0 0.0
  %1022 = vmatprep.subr.mxu0 0.0
  %1023 = vmatpush1.msra.mxu0 0.0
  %1024 = vmatprep.subr.mxu0 0.0
  %1025 = vmatpush1.msra.mxu0 0.0
  %1026 = vmatprep.subr.mxu0 0.0
  %1027 = vmatpush1.msra.mxu0 0.0
  %1028 = vmatprep.subr.mxu0 0.0
  %1029 = vmatpush1.msra.mxu0 0.0
  %1030 = vmatprep.subr.mxu0 0.0
  %1031 = vmatpush1.msra.mxu0 0.0
  %1032 = vmatprep.subr.mxu0 0.0
  %1033 = vmatpush1.msra.mxu0 0.0
  %1034 = vmatprep.subr.mxu0 0.0
  %1035 = vmatpush1.msra.mxu0 0.0
  %1036 = vmatprep.subr.mxu0 0.0
  %1037 = vmatpush1.msra.mxu0 0.0
  %1038 = vmatprep.subr.mxu0 0.0
  %1039 = vmatpush1.msra.mxu0 0.0
  %1040 = vmatprep.subr.mxu0 0.0
  %1041 = vmatpush1.msra.mxu0 0.0
  %1042 = vmatprep.mubr.f32.mxu0 0.0
  %1043 = vmatmul.mubr.f32.gmra.mrb[0].mxu0 %v967
  %v1044 = vpop.f32.mrb[0].mxu0
  %v1045 = vadd.f32 0.0, %v1044
  %v1046 = vpop.f32.mrb[0].mxu0
  %v1047 = vadd.f32 0.0, %v1046
  %1048 = vmatprep.mubr.f32.mxu0 0.0
  %1049 = vmatmul.mubr.f32.gmra.mrb[0].mxu0 %v970
  %v1050 = vpop.f32.mrb[0].mxu0
  %v1051 = vadd.f32 0.0, %v1050
  %v1052 = vpop.f32.mrb[0].mxu0
  %v1053 = vadd.f32 0.0, %v1052
  %1054 = vmatprep.mubr.f32.mxu0 0.0
  %1055 = vmatmul.mubr.f32.gmra.mrb[0].mxu0 %v973
  %v1056 = vpop.f32.mrb[0].mxu0
  %v1057 = vadd.f32 0.0, %v1056
  %v1058 = vpop.f32.mrb[0].mxu0
  %v1059 = vadd.f32 0.0, %v1058
  %1060 = vmatprep.mubr.f32.mxu0 0.0
  %1061 = vmatmul.mubr.f32.gmra.mrb[0].mxu0 %v976
  %v1062 = vpop.f32.mrb[0].mxu0
  %v1063 = vadd.f32 0.0, %v1062
  %v1064 = vpop.f32.mrb[0].mxu0
  %v1065 = vadd.f32 0.0, %v1064
  %1066 = vdwg.mxu0
  %v1067 = vmul.f32 %v1045, 0.115129255
  %v1068 = vmul.f32 %v1047, 0.115129255
  %v1069 = vmul.f32 %v1051, 0.115129255
  %v1070 = vmul.f32 %v1053, 0.115129255
  %v1071 = vmul.f32 %v1057, 0.115129255
  %v1072 = vmul.f32 %v1059, 0.115129255
  %v1073 = vmul.f32 %v1063, 0.115129255
  %v1074 = vmul.f32 %v1065, 0.115129255
  %v1075 = vmul.f32 %v1067, 1.442695
  %v1076 = vpow.pop %v1075
  %v1077 = vmul.f32 %v1068, 1.442695
  %v1078 = vpow.pop %v1077
  %v1079 = vmul.f32 %v1069, 1.442695
  %v1080 = vpow.pop %v1079
  %v1081 = vmul.f32 %v1070, 1.442695
  %v1082 = vpow.pop %v1081
  %v1083 = vmul.f32 %v1071, 1.442695
  %v1084 = vpow.pop %v1083
  %v1085 = vmul.f32 %v1072, 1.442695
  %v1086 = vpow.pop %v1085
  %v1087 = vmul.f32 %v1073, 1.442695
  %v1088 = vpow.pop %v1087
  %v1089 = vmul.f32 %v1074, 1.442695
  %v1090 = vpow.pop %v1089
  %v1091 = vmul.f32 %v19, %v1076
  %v1092 = vmul.f32 %v20, %v1078
  %v1093 = vmul.f32 %v21, %v1080
  %v1094 = vmul.f32 %v22, %v1082
  %v1095 = vmul.f32 %v23, %v1084
  %v1096 = vmul.f32 %v24, %v1086
  %v1097 = vmul.f32 %v25, %v1088
  %v1098 = vmul.f32 %v26, %v1090
  %1099 = vst [vmem:[%s4] sm:$0xff] %v1091
  %1100 = vst [vmem:[%s4 + $0x8] sm:$0xff] %v1092
  %1101 = vst [vmem:[%s4 + $0x10] sm:$0xff] %v1093
  %1102 = vst [vmem:[%s4 + $0x18] sm:$0xff] %v1094
  %1103 = vst [vmem:[%s4 + $0x20] sm:$0xff] %v1095
  %1104 = vst [vmem:[%s4 + $0x28] sm:$0xff] %v1096
  %1105 = vst [vmem:[%s4 + $0x30] sm:$0xff] %v1097
  %1106 = vst [vmem:[%s4 + $0x38] sm:$0xff] %v1098
  %v1107 = vmul.f32 %v35, %v1076
  %v1108 = vmul.f32 %v36, %v1078
  %v1109 = vmul.f32 %v37, %v1080
  %v1110 = vmul.f32 %v38, %v1082
  %v1111 = vmul.f32 %v39, %v1084
  %v1112 = vmul.f32 %v40, %v1086
  %v1113 = vmul.f32 %v41, %v1088
  %v1114 = vmul.f32 %v42, %v1090
  %1115 = vst [vmem:[%s4 + $0x40] sm:$0xff] %v1107
  %1116 = vst [vmem:[%s4 + $0x48] sm:$0xff] %v1108
  %1117 = vst [vmem:[%s4 + $0x50] sm:$0xff] %v1109
  %1118 = vst [vmem:[%s4 + $0x58] sm:$0xff] %v1110
  %1119 = vst [vmem:[%s4 + $0x60] sm:$0xff] %v1111
  %1120 = vst [vmem:[%s4 + $0x68] sm:$0xff] %v1112
  %1121 = vst [vmem:[%s4 + $0x70] sm:$0xff] %v1113
  %1122 = vst [vmem:[%s4 + $0x78] sm:$0xff] %v1114
  %1123 = vst [vmem:[%s4 + $0x80] sm:$0xff] %v1076
  %1124 = vst [vmem:[%s4 + $0x88] sm:$0xff] %v1078
  %1125 = vst [vmem:[%s4 + $0x90] sm:$0xff] %v1080
  %1126 = vst [vmem:[%s4 + $0x98] sm:$0xff] %v1082
  %1127 = vst [vmem:[%s4 + $0xa0] sm:$0xff] %v1084
  %1128 = vst [vmem:[%s4 + $0xa8] sm:$0xff] %v1086
  %1129 = vst [vmem:[%s4 + $0xb0] sm:$0xff] %v1088
  %1130 = vst [vmem:[%s4 + $0xb8] sm:$0xff] %v1090
  // Predicated region
  $region18: #{model_wrapper_forward.1} parent=0 // pred_check
    _
  $region19: #{model_wrapper_forward.1} parent=0 // pred_check_branch
    %1132 = sbr.rel (0) target = $region21
  $region20: #{model_wrapper_forward.1} parent=0 // pred_region
    _
  $region21: #{model_wrapper_forward.1} parent=0 // pred_fallthru
    _
  // Predicated region
  $region22: #{model_wrapper_forward.1} parent=0 // pred_check
    _
  $region23: #{model_wrapper_forward.1} parent=0 // pred_check_branch
    %1134 = sbr.rel (0) target = $region25
  $region24: #{model_wrapper_forward.1} parent=0 // pred_region
    _
  $region25: #{model_wrapper_forward.1} parent=0 // pred_fallthru
    _
  // Predicated region
  $region26: #{model_wrapper_forward.1} parent=0 // pred_check
    _
  $region27: #{model_wrapper_forward.1} parent=0 // pred_check_branch
    %1136 = sbr.rel (0) target = $region29
  $region28: #{model_wrapper_forward.1} parent=0 // pred_region
    _
  $region29: #{model_wrapper_forward.1} parent=0 // pred_fallthru
    _
  // Predicated region
  $region30: #{model_wrapper_forward.1} parent=0 // pred_check
    _
  $region31: #{model_wrapper_forward.1} parent=0 // pred_check_branch
    %1138 = sbr.rel (0) target = $region33
  $region32: #{model_wrapper_forward.1} parent=0 // pred_region
    _
  $region33: #{model_wrapper_forward.1} parent=0 // pred_fallthru
    _

// kernel: reverse.1
$region0: #{reverse.1}
  %s0 = inlined_call_operand.vmem [shape: f32[29,127], index: 0, kind: input, shape index: {}]
  %s1 = inlined_call_operand.vmem [shape: f32[29,127], index: 1, kind: output, shape index: {}]
  %v2 = vlaneseq
  %v3 = vsub.s32 126, %v2
  %4 = vset.pattern.permute.xlu0 %v3
  $region1: #{reverse.1} parent=0
    #allocation0 [shape = 'u8[16384]{0}', space=vmem, size = 0x4000, scoped, tag = 'operand span for operand 0']
    #allocation1 [shape = 'u8[16384]{0}', space=vmem, size = 0x4000, scoped, tag = 'operand span for operand 1']
    // Predicated region
    $region2: #{reverse.1} parent=1 // pred_check
      _
    $region3: #{reverse.1} parent=1 // pred_check_branch
      %6 = sbr.rel (0) target = $region5
    $region4: #{reverse.1} parent=1 // pred_region
      // Predicated region
      $region6: #{reverse.1} parent=4 // pred_check
        _
      $region7: #{reverse.1} parent=4 // pred_check_branch
        %8 = sbr.rel (0) target = $region9
      $region8: #{reverse.1} parent=4 // pred_region
        // Predicated region
        $region21: #{reverse.1} parent=8 // pred_check
          _
        $region22: #{reverse.1} parent=8 // pred_check_branch
          %29 = sbr.rel (0) target = $region24
        $region23: #{reverse.1} parent=8 // pred_region
          loop: start=0, step=1, limit=1
          $region25: #{reverse.1} parent=23 // loop_pre_header
            _
          $region26: #{reverse.1} parent=23 // loop_header
            %s31 = sphi 0, %s35
            %p32 = scmp.ge.s32.totalorder %s31, 1
            %s36 = sphi %s0, %s0
            %s37 = sphi [#allocation0], [#allocation0]
          $region27: #{reverse.1} parent=23 // loop_header_branch
            %34 = sbr.rel (%p32) target = $region31
          $region28: #{reverse.1} parent=23 // loop_body
            %v38 = vld [vmem:[%s36] sm:$0xff]
            %39 = vst [vmem:[%s37] sm:$0xff] %v38
            %v40 = vld [vmem:[%s36 + $0x8] sm:$0xff]
            %41 = vst [vmem:[%s37 + $0x8] sm:$0xff] %v40
            %v42 = vld [vmem:[%s36 + $0x10] sm:$0xff]
            %43 = vst [vmem:[%s37 + $0x10] sm:$0xff] %v42
            %v44 = vld [vmem:[%s36 + $0x18] sm:$0xff]
            %45 = vst [vmem:[%s37 + $0x18] sm:$0xff] %v44
          $region29: #{reverse.1} parent=23 // loop_footer
            %s35 = sadd.s32 1, %s31
          $region30: #{reverse.1} parent=23 // loop_footer_branch
            %30 = sbr.rel target = $region26
          $region31: #{reverse.1} parent=23 // loop_exit
            _
        $region24: #{reverse.1} parent=8 // pred_fallthru
          _
        // Predicated region
        $region32: #{reverse.1} parent=8 // pred_check
          _
        $region33: #{reverse.1} parent=8 // pred_check_branch
          %47 = sbr.rel target = $region35
        $region34: #{reverse.1} parent=8 // pred_region
          _
        $region35: #{reverse.1} parent=8 // pred_fallthru
          _
      $region9: #{reverse.1} parent=4 // pred_fallthru
        _
      // Predicated region
      $region10: #{reverse.1} parent=4 // pred_check
        _
      $region11: #{reverse.1} parent=4 // pred_check_branch
        %10 = sbr.rel target = $region13
      $region12: #{reverse.1} parent=4 // pred_region
        loop: start=0, step=1, limit=1
        $region14: #{reverse.1} parent=12 // loop_pre_header
          _
        $region15: #{reverse.1} parent=12 // loop_header
          %s13 = sphi 0, %s17
          %p14 = scmp.ge.s32.totalorder %s13, 1
          %s18 = sphi %s0, %s0
          %s19 = sphi [#allocation0], [#allocation0]
        $region16: #{reverse.1} parent=12 // loop_header_branch
          %16 = sbr.rel (%p14) target = $region20
        $region17: #{reverse.1} parent=12 // loop_body
          %v20 = vld [vmem:[%s18] sm:$0xff]
          %21 = vst [vmem:[%s19] sm:$0xff] %v20
          %v22 = vld [vmem:[%s18 + $0x8] sm:$0xff]
          %23 = vst [vmem:[%s19 + $0x8] sm:$0xff] %v22
          %v24 = vld [vmem:[%s18 + $0x10] sm:$0xff]
          %25 = vst [vmem:[%s19 + $0x10] sm:$0xff] %v24
          %v26 = vld [vmem:[%s18 + $0x18] sm:$0xff]
          %27 = vst [vmem:[%s19 + $0x18] sm:$0xff] %v26
        $region18: #{reverse.1} parent=12 // loop_footer
          %s17 = sadd.s32 1, %s13
        $region19: #{reverse.1} parent=12 // loop_footer_branch
          %12 = sbr.rel target = $region15
        $region20: #{reverse.1} parent=12 // loop_exit
          _
      $region13: #{reverse.1} parent=4 // pred_fallthru
        _
    $region5: #{reverse.1} parent=1 // pred_fallthru
      _
    %48 = vnop
    %v49 = vld [vmem:[#allocation0] sm:$0xff]
    %50 = vperm.xlu0 %4, %v49
    %v51 = vpop.permute.xlu0 %50
    %52 = vst [vmem:[#allocation1] sm:$0xff] %v51
    %s53 = scalar_lea.vmem [#allocation1], 8
    %s54 = scalar_lea.vmem [#allocation0], 8
    %v55 = vld [vmem:[%s54] sm:$0xff]
    %56 = vperm.xlu0 %4, %v55
    %v57 = vpop.permute.xlu0 %56
    %58 = vst [vmem:[%s53] sm:$0xff] %v57
    %s59 = scalar_lea.vmem [#allocation1], 16
    %s60 = scalar_lea.vmem [#allocation0], 16
    %v61 = vld [vmem:[%s60] sm:$0xff]
    %62 = vperm.xlu0 %4, %v61
    %v63 = vpop.permute.xlu0 %62
    %64 = vst [vmem:[%s59] sm:$0xff] %v63
    %s65 = scalar_lea.vmem [#allocation1], 24
    %s66 = scalar_lea.vmem [#allocation0], 24
    %v67 = vld [vmem:[%s66] sm:$0xff]
    %68 = vperm.xlu0 %4, %v67
    %v69 = vpop.permute.xlu0 %68
    %70 = vst [vmem:[%s65] sm:$0xff] %v69
    // Predicated region
    $region36: #{reverse.1} parent=1 // pred_check
      _
    $region37: #{reverse.1} parent=1 // pred_check_branch
      %72 = sbr.rel (0) target = $region39
    $region38: #{reverse.1} parent=1 // pred_region
      // Predicated region
      $region40: #{reverse.1} parent=38 // pred_check
        _
      $region41: #{reverse.1} parent=38 // pred_check_branch
        %74 = sbr.rel (0) target = $region43
      $region42: #{reverse.1} parent=38 // pred_region
        // Predicated region
        $region55: #{reverse.1} parent=42 // pred_check
          _
        $region56: #{reverse.1} parent=42 // pred_check_branch
          %95 = sbr.rel (0) target = $region58
        $region57: #{reverse.1} parent=42 // pred_region
          loop: start=0, step=1, limit=1
          $region59: #{reverse.1} parent=57 // loop_pre_header
            _
          $region60: #{reverse.1} parent=57 // loop_header
            %s97 = sphi 0, %s101
            %p98 = scmp.ge.s32.totalorder %s97, 1
            %s102 = sphi [#allocation1], [#allocation1]
            %s103 = sphi %s1, %s1
          $region61: #{reverse.1} parent=57 // loop_header_branch
            %100 = sbr.rel (%p98) target = $region65
          $region62: #{reverse.1} parent=57 // loop_body
            %v104 = vld [vmem:[%s102] sm:$0xff]
            %105 = vst [vmem:[%s103] sm:$0xff] %v104
            %v106 = vld [vmem:[%s102 + $0x8] sm:$0xff]
            %107 = vst [vmem:[%s103 + $0x8] sm:$0xff] %v106
            %v108 = vld [vmem:[%s102 + $0x10] sm:$0xff]
            %109 = vst [vmem:[%s103 + $0x10] sm:$0xff] %v108
            %v110 = vld [vmem:[%s102 + $0x18] sm:$0xff]
            %111 = vst [vmem:[%s103 + $0x18] sm:$0xff] %v110
          $region63: #{reverse.1} parent=57 // loop_footer
            %s101 = sadd.s32 1, %s97
          $region64: #{reverse.1} parent=57 // loop_footer_branch
            %96 = sbr.rel target = $region60
          $region65: #{reverse.1} parent=57 // loop_exit
            _
        $region58: #{reverse.1} parent=42 // pred_fallthru
          _
        // Predicated region
        $region66: #{reverse.1} parent=42 // pred_check
          _
        $region67: #{reverse.1} parent=42 // pred_check_branch
          %113 = sbr.rel target = $region69
        $region68: #{reverse.1} parent=42 // pred_region
          _
        $region69: #{reverse.1} parent=42 // pred_fallthru
          _
      $region43: #{reverse.1} parent=38 // pred_fallthru
        _
      // Predicated region
      $region44: #{reverse.1} parent=38 // pred_check
        _
      $region45: #{reverse.1} parent=38 // pred_check_branch
        %76 = sbr.rel target = $region47
      $region46: #{reverse.1} parent=38 // pred_region
        loop: start=0, step=1, limit=1
        $region48: #{reverse.1} parent=46 // loop_pre_header
          _
        $region49: #{reverse.1} parent=46 // loop_header
          %s79 = sphi 0, %s83
          %p80 = scmp.ge.s32.totalorder %s79, 1
          %s84 = sphi [#allocation1], [#allocation1]
          %s85 = sphi %s1, %s1
        $region50: #{reverse.1} parent=46 // loop_header_branch
          %82 = sbr.rel (%p80) target = $region54
        $region51: #{reverse.1} parent=46 // loop_body
          %v86 = vld [vmem:[%s84] sm:$0xff]
          %87 = vst [vmem:[%s85] sm:$0xff] %v86
          %v88 = vld [vmem:[%s84 + $0x8] sm:$0xff]
          %89 = vst [vmem:[%s85 + $0x8] sm:$0xff] %v88
          %v90 = vld [vmem:[%s84 + $0x10] sm:$0xff]
          %91 = vst [vmem:[%s85 + $0x10] sm:$0xff] %v90
          %v92 = vld [vmem:[%s84 + $0x18] sm:$0xff]
          %93 = vst [vmem:[%s85 + $0x18] sm:$0xff] %v92
        $region52: #{reverse.1} parent=46 // loop_footer
          %s83 = sadd.s32 1, %s79
        $region53: #{reverse.1} parent=46 // loop_footer_branch
          %78 = sbr.rel target = $region49
        $region54: #{reverse.1} parent=46 // loop_exit
          _
      $region47: #{reverse.1} parent=38 // pred_fallthru
        _
    $region39: #{reverse.1} parent=1 // pred_fallthru
      _
    %114 = vnop

</llo_original>
